<compile_context>
chip_gen: v7x
topology: tpu7x:2x2x1
jax: 0.10.0
libtpu: 0.0.40
codegen_flags: <defaults>
</compile_context>

<pallas_src>
import math
from functools import partial

import jax
import jax.numpy as jnp
from jax.experimental import pallas as pl
from jax.experimental.pallas import tpu as pltpu

# ----------------------------- architecture constants -----------------------------
GROWTH = 48
GROWTH_PAD = 128                  # conv2 output written lane-dense (128) and sliced to 48
BN_SIZE = 4                       # bottleneck width = 4 * 48 = 192
BOTTLE = BN_SIZE * GROWTH
BLOCK_CONFIG = (6, 12, 36, 24)    # densenet161
NUM_INIT = 96
BN_EPS = 1e-5

CONV0_K = 7 * 7 * 6               # 294
CONV0_KP = 384                    # im2col K padded for lane-dense loads
CONV0_NP = 128                    # conv0 out channels padded 96 -> 128 for lane-dense stores

ARC_S = 30.0
ARC_M = 0.50
COS_M = math.cos(ARC_M)
SIN_M = math.sin(ARC_M)

VMEM_LIMIT = 48 * 1024 * 1024     # > v5e/v6e/v7x scoped defaults, < v7x physical 64 MiB


# ----------------------------- small helpers -----------------------------


def _round_up(x, m):
    return (x + m - 1) // m * m


def _pad_rows(m):
    """Row count for activation slabs so row tiles stay big and aligned."""
    if m >= 512:
        return _round_up(m, 512)
    if m >= 128:
        return _round_up(m, 128)
    return _round_up(m, 8)


def _row_tile_for(mp):
    for t in (512, 256, 128):
        if mp >= t and mp % t == 0:
            return t
    return mp


def _conv_wp(h, w):
    """Padded raster width for the 3x3 conv; multiple of 8 => sublane-aligned dy offsets."""
    del h
    return _round_up(w + 2, 8)


def _arch():
    """Static DenseNet-161 channel bookkeeping shared by init and forward."""
    blocks = []
    c = NUM_INIT
    for b, n_layers in enumerate(BLOCK_CONFIG):
        c_max = c + n_layers * GROWTH
        layers = [dict(ci=c + i * GROWTH, kp=_round_up(c + i * GROWTH, 128))
                  for i in range(n_layers)]
        blk = dict(c_in=c, c_max=c_max, cbuf=_round_up(c_max, 128),
                   layers=layers, has_trans=(b != len(BLOCK_CONFIG) - 1))
        c = c_max
        if blk["has_trans"]:
            blk["c_out"] = c // 2
            c //= 2
        blocks.append(blk)
    return blocks, c   # c == 2208 (feature dim)


# ----------------------------- Pallas kernels -----------------------------


def _bnr_mm_bnr_kernel(x_ref, s1_ref, b1_ref, w_ref, s2_ref, b2_ref, o_ref):
    # relu(bn1(x)) @ W1 (bf16 MXU, f32 acc), then relu(bn2(.)) -> bf16 out
    h = jnp.maximum(x_ref[...] * s1_ref[...] + b1_ref[...], 0.0)
    y = jnp.dot(h.astype(jnp.bfloat16), w_ref[...], preferred_element_type=jnp.float32)
    o_ref[...] = jnp.maximum(y * s2_ref[...] + b2_ref[...], 0.0).astype(o_ref.dtype)


@jax.jit
def bnr_mm_bnr(x, s1, b1, w1, s2, b2):
    mp = x.shape[0]
    kp, nn = w1.shape
    tm = _row_tile_for(mp)
    return pl.pallas_call(
        _bnr_mm_bnr_kernel,
        out_shape=jax.ShapeDtypeStruct((mp, nn), jnp.bfloat16),
        grid=(mp // tm,),
        in_specs=[
            pl.BlockSpec((tm, kp), lambda i: (i, 0)),   # only live channels of buf are fetched
            pl.BlockSpec((1, kp), lambda i: (0, 0)),
            pl.BlockSpec((1, kp), lambda i: (0, 0)),
            pl.BlockSpec((kp, nn), lambda i: (0, 0)),
            pl.BlockSpec((1, nn), lambda i: (0, 0)),
            pl.BlockSpec((1, nn), lambda i: (0, 0)),
        ],
        out_specs=pl.BlockSpec((tm, nn), lambda i: (i, 0)),
        compiler_params=pltpu.CompilerParams(
            dimension_semantics=("parallel",), vmem_limit_bytes=VMEM_LIMIT),
    )(x, s1, b1, w1, s2, b2)


def _bnr_mm_kernel(x_ref, s_ref, b_ref, w_ref, o_ref):
    h = jnp.maximum(x_ref[...] * s_ref[...] + b_ref[...], 0.0)
    y = jnp.dot(h.astype(jnp.bfloat16), w_ref[...], preferred_element_type=jnp.float32)
    o_ref[...] = y.astype(o_ref.dtype)


@jax.jit
def bnr_mm(x, s, b, w):
    mp = x.shape[0]
    kp, nn = w.shape
    tm = _row_tile_for(mp)
    return pl.pallas_call(
        _bnr_mm_kernel,
        out_shape=jax.ShapeDtypeStruct((mp, nn), jnp.bfloat16),
        grid=(mp // tm,),
        in_specs=[
            pl.BlockSpec((tm, kp), lambda i: (i, 0)),
            pl.BlockSpec((1, kp), lambda i: (0, 0)),
            pl.BlockSpec((1, kp), lambda i: (0, 0)),
            pl.BlockSpec((kp, nn), lambda i: (0, 0)),
        ],
        out_specs=pl.BlockSpec((tm, nn), lambda i: (i, 0)),
        compiler_params=pltpu.CompilerParams(
            dimension_semantics=("parallel",), vmem_limit_bytes=VMEM_LIMIT),
    )(x, s, b, w)


def _mm_bnr_kernel(x_ref, w_ref, s_ref, b_ref, o_ref):
    y = jnp.dot(x_ref[...], w_ref[...], preferred_element_type=jnp.float32)
    o_ref[...] = jnp.maximum(y * s_ref[...] + b_ref[...], 0.0).astype(o_ref.dtype)


@jax.jit
def mm_bn_relu(x, w, s, b):
    mp, k = x.shape
    nn = w.shape[1]
    tm = _row_tile_for(mp)
    return pl.pallas_call(
        _mm_bnr_kernel,
        out_shape=jax.ShapeDtypeStruct((mp, nn), jnp.bfloat16),
        grid=(mp // tm,),
        in_specs=[
            pl.BlockSpec((tm, k), lambda i: (i, 0)),
            pl.BlockSpec((k, nn), lambda i: (0, 0)),
            pl.BlockSpec((1, nn), lambda i: (0, 0)),
            pl.BlockSpec((1, nn), lambda i: (0, 0)),
        ],
        out_specs=pl.BlockSpec((tm, nn), lambda i: (i, 0)),
        compiler_params=pltpu.CompilerParams(
            dimension_semantics=("parallel",), vmem_limit_bytes=VMEM_LIMIT),
    )(x, w, s, b)


def _conv3_kernel(x_ref, w_ref, o_ref, *, wp, out_rows):
    # 3x3 conv over a flattened zero-padded raster. The 9 taps are statically unrolled:
    # each tap is a constant row shift of the same raster, so all slices are static ref views
    # and accumulation happens in f32 values (no output read-modify-write across a grid axis).
    acc = None
    for t in range(9):
        dy, dx = divmod(t, 3)
        off = (dy + 1) * wp + (dx - 1)                       # static; dy part sublane-aligned
        patch = x_ref[pl.ds(off, out_rows), :]               # (out_rows, C) bf16
        part = jnp.dot(patch, w_ref[t], preferred_element_type=jnp.float32)
        acc = part if acc is None else acc + part
    o_ref[...] = acc.astype(o_ref.dtype)


@partial(jax.jit, static_argnames=("h", "w"))
def conv3x3(xf, w9, *, h, w):
    """xf: (N, (h+4)*wp, C) bf16 flattened padded raster; w9: (9, C, GROWTH_PAD) bf16."""
    n, r, c = xf.shape
    wp = _conv_wp(h, w)
    out_rows = h * wp
    go = w9.shape[-1]
    assert r == (h + 4) * wp
    return pl.pallas_call(
        partial(_conv3_kernel, wp=wp, out_rows=out_rows),
        out_shape=jax.ShapeDtypeStruct((n, out_rows, go), jnp.bfloat16),
        grid=(n,),
        in_specs=[
            pl.BlockSpec((None, r, c), lambda nb: (nb, 0, 0)),
            pl.BlockSpec((9, c, go), lambda nb: (0, 0, 0)),
        ],
        out_specs=pl.BlockSpec((None, out_rows, go), lambda nb: (nb, 0, 0)),
        compiler_params=pltpu.CompilerParams(
            dimension_semantics=("parallel",), vmem_limit_bytes=VMEM_LIMIT),
    )(xf, w9)


def _bn_relu_mean_kernel(x_ref, s_ref, b_ref, o_ref, *, hw):
    # norm5 + relu + global average pool for one batch item, fused (no f32 slab round-trip).
    h = jnp.maximum(x_ref[...] * s_ref[...] + b_ref[...], 0.0)          # f32
    row = jax.lax.broadcasted_iota(jnp.int32, h.shape, 0)
    h = jnp.where(row < hw, h, 0.0)                                     # mask padded rows
    mean = jnp.sum(h, axis=0, keepdims=True) * (1.0 / hw)               # (1, cbuf)
    o_ref[...] = jnp.broadcast_to(mean, o_ref.shape)


@partial(jax.jit, static_argnames=("hw",))
def bn_relu_mean(x3, s, b, *, hw):
    n, hwp, cbuf = x3.shape
    out = pl.pallas_call(
        partial(_bn_relu_mean_kernel, hw=hw),
        out_shape=jax.ShapeDtypeStruct((n, 8, cbuf), jnp.float32),
        grid=(n,),
        in_specs=[
            pl.BlockSpec((None, hwp, cbuf), lambda nb: (nb, 0, 0)),
            pl.BlockSpec((1, cbuf), lambda nb: (0, 0)),
            pl.BlockSpec((1, cbuf), lambda nb: (0, 0)),
        ],
        out_specs=pl.BlockSpec((None, 8, cbuf), lambda nb: (nb, 0, 0)),
        compiler_params=pltpu.CompilerParams(
            dimension_semantics=("parallel",), vmem_limit_bytes=VMEM_LIMIT),
    )(x3, s, b)
    return out[:, 0, :]


def _arc_kernel(x_ref, w_ref, lab_ref, o_ref):
    cosine = jnp.dot(x_ref[...], w_ref[...], preferred_element_type=jnp.float32)
    sine = jnp.sqrt(jnp.clip(1.0 - cosine * cosine, 0.0, 1.0))
    phi = cosine * COS_M - sine * SIN_M
    phi = jnp.where(cosine > 0.0, phi, cosine)                  # easy_margin=True
    tn = o_ref.shape[-1]
    col = jax.lax.broadcasted_iota(jnp.int32, cosine.shape, 1) + pl.program_id(0) * tn
    one_hot = (col == lab_ref[...]).astype(jnp.float32)
    o_ref[...] = (one_hot * phi + (1.0 - one_hot) * cosine) * ARC_S


@jax.jit
def arc_head(f_n, w_t, labels_col):
    bsz, k = f_n.shape
    nc_pad = w_t.shape[1]
    tn = 128
    return pl.pallas_call(
        _arc_kernel,
        out_shape=jax.ShapeDtypeStruct((bsz, nc_pad), jnp.float32),
        grid=(nc_pad // tn,),
        in_specs=[
            pl.BlockSpec((bsz, k), lambda j: (0, 0)),
            pl.BlockSpec((k, tn), lambda j: (0, j)),
            pl.BlockSpec((bsz, 1), lambda j: (0, 0)),
        ],
        out_specs=pl.BlockSpec((bsz, tn), lambda j: (0, j)),
        compiler_params=pltpu.CompilerParams(
            dimension_semantics=("parallel",), vmem_limit_bytes=VMEM_LIMIT),
    )(f_n, w_t, labels_col)


# ----------------------------- JAX glue -----------------------------


def im2col(x, kh, kw, stride, pad):
    """x: (N,H,W,C) -> (N,Ho,Wo,kh*kw*C), patch features ordered (kh, kw, C)."""
    n, h, w, c = x.shape
    xp = jnp.pad(x, ((0, 0), (pad, pad), (pad, pad), (0, 0)))
    ho = (h + 2 * pad - kh) // stride + 1
    wo = (w + 2 * pad - kw) // stride + 1
    cols = []
    for i in range(kh):
        for j in range(kw):
            cols.append(xp[:, i:i + stride * ho:stride, j:j + stride * wo:stride, :])
    return jnp.concatenate(cols, axis=-1)


# ----------------------------- parameter init (deterministic) -----------------------------


def _he(key, shape, fan_in):
    # Deterministic He(fan_in) init (exact PyTorch RNG streams cannot be reproduced anyway).
    return jax.random.normal(key, shape, jnp.float32) * math.sqrt(2.0 / fan_in)


def _bn_fold(c_valid, c_pad):
    # _init_weight: BN weight=1, bias=0; running stats mean=0, var=1 (eval-mode fold).
    # TODO(synk): training-mode BatchNorm (batch statistics) is not modeled; inference-mode
    #             running stats are folded to a per-channel scale/shift instead.
    scale = jnp.zeros((1, c_pad), jnp.float32).at[:, :c_valid].set(
        1.0 / math.sqrt(1.0 + BN_EPS))
    shift = jnp.zeros((1, c_pad), jnp.float32)
    return scale, shift


def init_params(key, n_classes):
    arch, feat_dim = _arch()
    params = {}

    # conv0: "original" (96,3,7,7) weight, average over input channels, replicate x6
    # (mirrors: new_conv.weight[:, :] = stack([mean(conv0.weight, 1)] * 6, dim=1))
    w_orig = _he(jax.random.fold_in(key, 0), (96, 3, 7, 7), fan_in=3 * 49)
    w0 = jnp.stack([jnp.mean(w_orig, axis=1)] * 6, axis=1)          # (96,6,7,7) OIHW
    w0 = jnp.transpose(w0, (2, 3, 1, 0)).reshape(CONV0_K, 96)
    w0 = jnp.zeros((CONV0_KP, CONV0_NP), jnp.float32).at[:CONV0_K, :96].set(w0)
    params["conv0_w"] = w0.astype(jnp.bfloat16)
    params["norm0_s"], params["norm0_b"] = _bn_fold(96, CONV0_NP)

    blocks_p = []
    for b, blk in enumerate(arch):
        layers_p = []
        for i, lm in enumerate(blk["layers"]):
            ci, kp = lm["ci"], lm["kp"]
            w1 = _he(jax.random.fold_in(key, 1000 + b * 100 + i), (ci, BOTTLE), fan_in=ci)
            w1 = jnp.zeros((kp, BOTTLE), jnp.float32).at[:ci].set(w1).astype(jnp.bfloat16)
            w2 = _he(jax.random.fold_in(key, 5000 + b * 100 + i),
                     (3, 3, BOTTLE, GROWTH), fan_in=9 * BOTTLE).reshape(9, BOTTLE, GROWTH)
            w2 = jnp.zeros((9, BOTTLE, GROWTH_PAD), jnp.float32).at[..., :GROWTH].set(
                w2).astype(jnp.bfloat16)
            s1, b1 = _bn_fold(ci, kp)
            s2, b2 = _bn_fold(BOTTLE, BOTTLE)
            layers_p.append(dict(bn1_s=s1, bn1_b=b1, w1=w1, bn2_s=s2, bn2_b=b2, w2=w2))
        bp = dict(layers=layers_p)
        if blk["has_trans"]:
            c, cbuf, c_out = blk["c_max"], blk["cbuf"], blk["c_out"]
            wt = _he(jax.random.fold_in(key, 9000 + b), (c, c_out), fan_in=c)
            wt = jnp.zeros((cbuf, c_out), jnp.float32).at[:c].set(wt).astype(jnp.bfloat16)
            st, bt = _bn_fold(c, cbuf)
            bp["trans"] = dict(bn_s=st, bn_b=bt, w=wt)
        blocks_p.append(bp)
    params["blocks"] = blocks_p

    cbuf5 = _round_up(feat_dim, 128)
    params["norm5_s"], params["norm5_b"] = _bn_fold(feat_dim, cbuf5)

    # ArcMarginProduct weight: xavier_uniform (out, in); pre-normalized + transposed + class-padded.
    nc_pad = _round_up(n_classes, 128)
    limit = math.sqrt(6.0 / (feat_dim + n_classes))
    aw = jax.random.uniform(jax.random.fold_in(key, 42), (n_classes, feat_dim),
                            jnp.float32, -limit, limit)
    aw = aw / jnp.maximum(jnp.linalg.norm(aw, axis=1, keepdims=True), 1e-12)
    awt = jnp.zeros((feat_dim, nc_pad), jnp.float32).at[:, :n_classes].set(jnp.transpose(aw))
    params["arc_w_t"] = awt.astype(jnp.bfloat16)
    return params


# ----------------------------- forward -----------------------------


@partial(jax.jit, static_argnames=("n_classes",))
def _forward(params, x_nchw, labels, *, n_classes):
    arch, feat_dim = _arch()
    n = x_nchw.shape[0]
    x = jnp.transpose(x_nchw, (0, 2, 3, 1)).astype(jnp.bfloat16)     # NCHW -> NHWC, bf16

    # features.conv0 (7x7/2, pad 3, bias=False) + norm0 + relu0, fused GEMM epilogue.
    # TODO(synk): 7x7 patch extraction (im2col) stays in plain JAX glue.
    p = im2col(x, 7, 7, 2, 3)
    _, ho, wo, kc = p.shape
    m0 = n * ho * wo
    mp0 = _pad_rows(m0)
    a = jnp.pad(p.reshape(m0, kc), ((0, mp0 - m0), (0, CONV0_KP - kc)))
    y = mm_bn_relu(a, params["conv0_w"], params["norm0_s"], params["norm0_b"])
    y = y[:m0].reshape(n, ho, wo, CONV0_NP)          # channels 96..127 are exactly zero

    # features.pool0 : MaxPool2d(3, stride=2, padding=1). Inputs are >= 0 post-ReLU, so a
    # 0-valued init / 0-padding gives the exact result.
    # TODO(synk): max pooling done with lax.reduce_window in plain JAX, not a Pallas kernel.
    y = jax.lax.reduce_window(y, jnp.zeros((), y.dtype), jax.lax.max,
                              (1, 3, 3, 1), (1, 2, 2, 1),
                              [(0, 0), (1, 1), (1, 1), (0, 0)])

    hh, ww = y.shape[1], y.shape[2]
    feats = None
    for blk, bp in zip(arch, params["blocks"]):
        m = n * hh * ww
        mp = _pad_rows(m)
        cbuf = blk["cbuf"]
        wp = _conv_wp(hh, ww)
        # channel-padded bf16 concat buffer; not-yet-produced channels stay exactly zero
        buf = jnp.zeros((mp, cbuf), jnp.bfloat16)
        buf = buf.at[:m, :y.shape[-1]].set(y.reshape(m, y.shape[-1]))
        for lm, lp in zip(blk["layers"], bp["layers"]):
            # norm1+relu1 + conv1(1x1) + norm2+relu2 fused; reads only live channels of buf
            h2 = bnr_mm_bnr(buf, lp["bn1_s"], lp["bn1_b"], lp["w1"],
                            lp["bn2_s"], lp["bn2_b"])
            hs = h2[:m].reshape(n, hh, ww, BOTTLE)
            # conv2 (3x3, pad 1): 9-tap MXU accumulation over a flattened padded raster
            xf = jnp.pad(hs, ((0, 0), (2, 2), (1, wp - ww - 1), (0, 0)))
            xf = xf.reshape(n, (hh + 4) * wp, BOTTLE)
            o = conv3x3(xf, lp["w2"], h=hh, w=ww)               # (n, hh*wp, 128) bf16
            new = o.reshape(n, hh, wp, GROWTH_PAD)[:, :, 1:1 + ww, :GROWTH]
            # TODO(synk): writeback kept as an in-jit dynamic-update-slice rather than aliasing
            #             buf into the conv kernel's output BlockSpec.
            buf = buf.at[:m, lm["ci"]:lm["ci"] + GROWTH].set(new.reshape(m, GROWTH))
        if blk["has_trans"]:
            t = bp["trans"]
            c_out = blk["c_out"]
            h = bnr_mm(buf, t["bn_s"], t["bn_b"], t["w"])[:m].reshape(n, hh, ww, c_out)
            # TODO(synk): AvgPool2d(2,2) as plain-JAX reshape+mean (exact), not Pallas.
            y = h.reshape(n, hh // 2, 2, ww // 2, 2, c_out).mean(axis=(2, 4)).astype(jnp.bfloat16)
            hh, ww = hh // 2, ww // 2
        else:
            # features.norm5 + relu + adaptive_avg_pool2d(1,1), fused; classifier = myIdentity
            hw = hh * ww
            hwp = _round_up(hw, 8)
            x3 = buf[:m].reshape(n, hw, cbuf)
            if hwp != hw:
                x3 = jnp.pad(x3, ((0, 0), (0, hwp - hw), (0, 0)))
            feats = bn_relu_mean(x3, params["norm5_s"], params["norm5_b"], hw=hw)[:, :feat_dim]

    # ArcMarginProduct(easy_margin=True): cosine = normalize(x) @ normalize(W).T + margin
    f_n = feats / jnp.maximum(jnp.linalg.norm(feats, axis=1, keepdims=True), 1e-12)
    logits = arc_head(f_n.astype(jnp.bfloat16), params["arc_w_t"],
                      labels.astype(jnp.int32).reshape(n, 1))
    return logits[:, :n_classes]


def forward(params, x_nchw, labels=None, *, n_classes):
    if labels is None:
        labels = jnp.zeros((x_nchw.shape[0],), jnp.float32)   # torch.zeros(x.shape[0])
    return _forward(params, x_nchw, labels, n_classes=n_classes)


# ----------------------------- main -----------------------------

if __name__ == "__main__":
    key = jax.random.PRNGKey(0)
    pkey, xkey = jax.random.split(key)
    n_classes = 16

    params = init_params(pkey, n_classes)

    # DenseNet-161 has 5 stride-2 stages, so the smallest valid spatial size is 32x32;
    # the modified conv0 takes 6 input channels (NCHW, like PyTorch).
    x = jax.random.normal(xkey, (2, 6, 32, 32), jnp.float32)

    out = forward(params, x, n_classes=n_classes)   # labels=None -> zeros, as in Network.forward
    out = jax.block_until_ready(out)

    assert out.shape == (2, n_classes), out.shape
    assert out.dtype == jnp.float32
    assert bool(jnp.all(jnp.isfinite(out)))
    print("KERNEL_OK")
</pallas_src>

<mosaic_0001>
module attributes {stable_mosaic.version = 11 : i64} {
  func.func @_mm_bnr_kernel(%arg0: i32, %arg1: memref<512x384xbf16, #tpu.memory_space<vmem>>, %arg2: memref<384x128xbf16, #tpu.memory_space<vmem>>, %arg3: memref<1x128xf32, #tpu.memory_space<vmem>>, %arg4: memref<1x128xf32, #tpu.memory_space<vmem>>, %arg5: memref<512x128xbf16, #tpu.memory_space<vmem>>) attributes {dimension_semantics = [#tpu.dimension_semantics<parallel>], iteration_bounds = array<i64: 1>, scalar_prefetch = 0 : i64, scratch_operands = 0 : i64, tpu.core_type = #tpu.core_type<tc>, window_params = [{transform_indices = @transform_0, window_bounds = array<i64: 512, 384>}, {pipeline_mode = #tpu.pipeline_mode<synchronous>, transform_indices = @transform_1, window_bounds = array<i64: 384, 128>}, {pipeline_mode = #tpu.pipeline_mode<synchronous>, transform_indices = @transform_2, window_bounds = array<i64: 1, 128>}, {pipeline_mode = #tpu.pipeline_mode<synchronous>, transform_indices = @transform_3, window_bounds = array<i64: 1, 128>}, {transform_indices = @transform_4, window_bounds = array<i64: 512, 128>}]} {
    %c0 = arith.constant 0 : index
    %c0_0 = arith.constant 0 : index
    %0 = vector.load %arg1[%c0, %c0_0] : memref<512x384xbf16, #tpu.memory_space<vmem>>, vector<512x384xbf16>
    %c0_1 = arith.constant 0 : index
    %c0_2 = arith.constant 0 : index
    %1 = vector.load %arg2[%c0_1, %c0_2] : memref<384x128xbf16, #tpu.memory_space<vmem>>, vector<384x128xbf16>
    %cst = arith.constant dense<0.000000e+00> : vector<512x128xf32>
    %2 = tpu.matmul %0, %1, %cst {dimension_numbers = #tpu.dot_dimension_numbers<[1], [0], [0], [1], [0, 0, 1, 1], [], []>} : vector<512x384xbf16>, vector<384x128xbf16>, vector<512x128xf32> -> vector<512x128xf32>
    %c0_3 = arith.constant 0 : index
    %c0_4 = arith.constant 0 : index
    %3 = vector.load %arg3[%c0_3, %c0_4] : memref<1x128xf32, #tpu.memory_space<vmem>>, vector<1x128xf32>
    %4 = vector.broadcast %3 : vector<1x128xf32> to vector<512x128xf32>
    %5 = arith.mulf %2, %4 : vector<512x128xf32>
    %c0_5 = arith.constant 0 : index
    %c0_6 = arith.constant 0 : index
    %6 = vector.load %arg4[%c0_5, %c0_6] : memref<1x128xf32, #tpu.memory_space<vmem>>, vector<1x128xf32>
    %7 = vector.broadcast %6 : vector<1x128xf32> to vector<512x128xf32>
    %8 = arith.addf %5, %7 : vector<512x128xf32>
    %cst_7 = arith.constant 0.000000e+00 : f32
    %9 = vector.broadcast %cst_7 : f32 to vector<512x128xf32>
    %10 = arith.maximumf %8, %9 : vector<512x128xf32>
    %11 = arith.truncf %10 : vector<512x128xf32> to vector<512x128xbf16>
    %c0_8 = arith.constant 0 : index
    %c0_9 = arith.constant 0 : index
    %12 = vector.load %arg5[%c0_8, %c0_9] : memref<512x128xbf16, #tpu.memory_space<vmem>>, vector<512x128xbf16>
    tpu.vector_store %arg5[%c0_8, %c0_9], %11 {strides = array<i32>} : memref<512x128xbf16, #tpu.memory_space<vmem>>, vector<512x128xbf16>,
    return
  }
  func.func @transform_0(%arg0: i32) -> (i32, i32) {
    %c0_i32 = arith.constant 0 : i32
    %c0_i32_0 = arith.constant 0 : i32
    return %arg0, %c0_i32 : i32, i32
  }
  func.func @transform_1(%arg0: i32) -> (i32, i32) {
    %c0_i32 = arith.constant 0 : i32
    %c0_i32_0 = arith.constant 0 : i32
    %c0_i32_1 = arith.constant 0 : i32
    return %c0_i32, %c0_i32_0 : i32, i32
  }
  func.func @transform_2(%arg0: i32) -> (i32, i32) {
    %c0_i32 = arith.constant 0 : i32
    %c0_i32_0 = arith.constant 0 : i32
    %c0_i32_1 = arith.constant 0 : i32
    return %c0_i32, %c0_i32_0 : i32, i32
  }
  func.func @transform_3(%arg0: i32) -> (i32, i32) {
    %c0_i32 = arith.constant 0 : i32
    %c0_i32_0 = arith.constant 0 : i32
    %c0_i32_1 = arith.constant 0 : i32
    return %c0_i32, %c0_i32_0 : i32, i32
  }
  func.func @transform_4(%arg0: i32) -> (i32, i32) {
    %c0_i32 = arith.constant 0 : i32
    %c0_i32_0 = arith.constant 0 : i32
    return %arg0, %c0_i32 : i32, i32
  }
}

</mosaic_0001>

<llo_original>
// kernel: mm_bn_relu.1
$region0: #{mm_bn_relu.1}
  #allocation0 [shape = 'u32[]', space=smem, size = 0x4, offset = 0x4, fixed_abs, tag = 'smem constant byte address 0x4 - core index']
  #allocation1 [shape = 'u32[144,128]{1,0:T(1,128)}', space=vmem, size = 0x12000, scoped, tag = 'internal scratch']
  %s0 = inlined_call_operand.hbm [shape: bf16[512,384], index: 0, kind: input, shape index: {}]
  %s1 = inlined_call_operand.hbm [shape: bf16[384,128], index: 1, kind: input, shape index: {}]
  %s2 = inlined_call_operand.vmem [shape: f32[1,128], index: 2, kind: input, shape index: {}]
  %s3 = inlined_call_operand.vmem [shape: f32[1,128], index: 3, kind: input, shape index: {}]
  %s4 = inlined_call_operand.hbm [shape: bf16[512,128], index: 4, kind: output, shape index: {}]
  %s5 = sld [smem:[#allocation0]]
  $region34: #{mm_bn_relu.1} parent=0
    _
  %s7 = ssub.s32 1, %s5
  %s8 = scalar_select 0, %s7, %s5
  $region1: #{mm_bn_relu.1} parent=0
    #allocation2 [shape = 'u8[393216]{0}', space=vmem, size = 0x60000, scoped, tag = 'input window, operand 0, single buffered']
    #allocation3 [shape = 's32[1]{0}', space=sflag, size = 0x4, scoped, tag = 'scoped memory for mm_bn_relu.1']
    #allocation4 [shape = 's32[1]{0}', space=sflag, size = 0x4, scoped, tag = 'scoped memory for mm_bn_relu.1']
    #allocation5 [shape = 'u8[98304]{0}', space=vmem, size = 0x18000, scoped, tag = 'input window, operand 1, single buffered']
    #allocation6 [shape = 's32[1]{0}', space=sflag, size = 0x4, scoped, tag = 'scoped memory for mm_bn_relu.1']
    #allocation7 [shape = 'u8[131072]{0}', space=vmem, size = 0x20000, scoped, tag = 'output window, operand 0, single buffered']
    %9 = vsyncpa [#allocation3], 0
    %10 = vsyncpa [#allocation6], 0
    %11 = vsyncpa [#allocation4], 0
    // Predicated region
    $region2: #{mm_bn_relu.1} parent=1 // pred_check
      _
    $region3: #{mm_bn_relu.1} parent=1 // pred_check_branch
      %13 = sbr.rel (0) target = $region5
    $region4: #{mm_bn_relu.1} parent=1 // pred_region
      %s15 = ssub.s32 12288, 12288
      %16 = vsyncadd [#allocation3], %s15
      %s17 = sshll.u32 [#allocation2], 4
      %s18 = int_to_ptr.vmem [resolvable:$true] %s17
      %23 = dma.hbm_to_vmem [thread:$0]  %s0, 12288, %s18, [#allocation3], 192, 192, 12
    $region5: #{mm_bn_relu.1} parent=1 // pred_fallthru
      _
    // Predicated region
    $region6: #{mm_bn_relu.1} parent=1 // pred_check
      _
    $region7: #{mm_bn_relu.1} parent=1 // pred_check_branch
      %25 = sbr.rel (0) target = $region9
    $region8: #{mm_bn_relu.1} parent=1 // pred_region
      %s27 = ssub.s32 3072, 3072
      %28 = vsyncadd [#allocation6], %s27
      %s29 = sshll.u32 [#allocation5], 4
      %s30 = int_to_ptr.vmem [resolvable:$true] %s29
      %35 = dma.hbm_to_vmem [thread:$0]  %s1, 3072, %s30, [#allocation6], 64, 64, 4
    $region9: #{mm_bn_relu.1} parent=1 // pred_fallthru
      _
    // Predicated region
    $region10: #{mm_bn_relu.1} parent=1 // pred_check
      _
    $region11: #{mm_bn_relu.1} parent=1 // pred_check_branch
      %37 = sbr.rel (0) target = $region13
    $region12: #{mm_bn_relu.1} parent=1 // pred_region
      _
    $region13: #{mm_bn_relu.1} parent=1 // pred_fallthru
      _
    // Predicated region
    $region14: #{mm_bn_relu.1} parent=1 // pred_check
      _
    $region15: #{mm_bn_relu.1} parent=1 // pred_check_branch
      %39 = sbr.rel (0) target = $region17
    $region16: #{mm_bn_relu.1} parent=1 // pred_region
      _
    $region17: #{mm_bn_relu.1} parent=1 // pred_fallthru
      _
    // Predicated region
    $region18: #{mm_bn_relu.1} parent=1 // pred_check
      _
    $region19: #{mm_bn_relu.1} parent=1 // pred_check_branch
      %41 = sbr.rel (0) target = $region21
    $region20: #{mm_bn_relu.1} parent=1 // pred_region
      %42 = dma.done [#allocation3], 12288
    $region21: #{mm_bn_relu.1} parent=1 // pred_fallthru
      _
    // Predicated region
    $region22: #{mm_bn_relu.1} parent=1 // pred_check
      _
    $region23: #{mm_bn_relu.1} parent=1 // pred_check_branch
      %44 = sbr.rel (0) target = $region25
    $region24: #{mm_bn_relu.1} parent=1 // pred_region
      %45 = dma.done [#allocation6], 3072
    $region25: #{mm_bn_relu.1} parent=1 // pred_fallthru
      _
    %v47 = vld [vmem:[#allocation2] sm:$0xff]
    %v48 = vld [vmem:[#allocation2 + $0x8] sm:$0xf]
    %v49 = vld [vmem:[#allocation2 + $0xc] sm:$0xff]
    %v50 = vld [vmem:[#allocation2 + $0x14] sm:$0xf]
    %v51 = vld [vmem:[#allocation2 + $0x18] sm:$0xff]
    %v52 = vld [vmem:[#allocation2 + $0x20] sm:$0xf]
    %v53 = vld [vmem:[#allocation2 + $0x24] sm:$0xff]
    %v54 = vld [vmem:[#allocation2 + $0x2c] sm:$0xf]
    %v55 = vld [vmem:[#allocation2 + $0x30] sm:$0xff]
    %v56 = vld [vmem:[#allocation2 + $0x38] sm:$0xf]
    %v57 = vld [vmem:[#allocation2 + $0x3c] sm:$0xff]
    %v58 = vld [vmem:[#allocation2 + $0x44] sm:$0xf]
    %v59 = vld [vmem:[#allocation2 + $0x48] sm:$0xff]
    %v60 = vld [vmem:[#allocation2 + $0x50] sm:$0xf]
    %v61 = vld [vmem:[#allocation2 + $0x54] sm:$0xff]
    %v62 = vld [vmem:[#allocation2 + $0x5c] sm:$0xf]
    %v63 = vld [vmem:[#allocation2 + $0x60] sm:$0xff]
    %v64 = vld [vmem:[#allocation2 + $0x68] sm:$0xf]
    %v65 = vld [vmem:[#allocation2 + $0x6c] sm:$0xff]
    %v66 = vld [vmem:[#allocation2 + $0x74] sm:$0xf]
    %v67 = vld [vmem:[#allocation2 + $0x78] sm:$0xff]
    %v68 = vld [vmem:[#allocation2 + $0x80] sm:$0xf]
    %v69 = vld [vmem:[#allocation2 + $0x84] sm:$0xff]
    %v70 = vld [vmem:[#allocation2 + $0x8c] sm:$0xf]
    %v71 = vld [vmem:[#allocation2 + $0x90] sm:$0xff]
    %v72 = vld [vmem:[#allocation2 + $0x98] sm:$0xf]
    %v73 = vld [vmem:[#allocation2 + $0x9c] sm:$0xff]
    %v74 = vld [vmem:[#allocation2 + $0xa4] sm:$0xf]
    %v75 = vld [vmem:[#allocation2 + $0xa8] sm:$0xff]
    %v76 = vld [vmem:[#allocation2 + $0xb0] sm:$0xf]
    %v77 = vld [vmem:[#allocation2 + $0xb4] sm:$0xff]
    %v78 = vld [vmem:[#allocation2 + $0xbc] sm:$0xf]
    %v79 = vld [vmem:[#allocation2 + $0xc0] sm:$0xff]
    %v80 = vld [vmem:[#allocation2 + $0xc8] sm:$0xf]
    %v81 = vld [vmem:[#allocation2 + $0xcc] sm:$0xff]
    %v82 = vld [vmem:[#allocation2 + $0xd4] sm:$0xf]
    %v83 = vld [vmem:[#allocation2 + $0xd8] sm:$0xff]
    %v84 = vld [vmem:[#allocation2 + $0xe0] sm:$0xf]
    %v85 = vld [vmem:[#allocation2 + $0xe4] sm:$0xff]
    %v86 = vld [vmem:[#allocation2 + $0xec] sm:$0xf]
    %v87 = vld [vmem:[#allocation2 + $0xf0] sm:$0xff]
    %v88 = vld [vmem:[#allocation2 + $0xf8] sm:$0xf]
    %v89 = vld [vmem:[#allocation2 + $0xfc] sm:$0xff]
    %v90 = vld [vmem:[#allocation2 + $0x104] sm:$0xf]
    %v91 = vld [vmem:[#allocation2 + $0x108] sm:$0xff]
    %v92 = vld [vmem:[#allocation2 + $0x110] sm:$0xf]
    %v93 = vld [vmem:[#allocation2 + $0x114] sm:$0xff]
    %v94 = vld [vmem:[#allocation2 + $0x11c] sm:$0xf]
    %v95 = vld [vmem:[#allocation2 + $0x120] sm:$0xff]
    %v96 = vld [vmem:[#allocation2 + $0x128] sm:$0xf]
    %v97 = vld [vmem:[#allocation2 + $0x12c] sm:$0xff]
    %v98 = vld [vmem:[#allocation2 + $0x134] sm:$0xf]
    %v99 = vld [vmem:[#allocation2 + $0x138] sm:$0xff]
    %v100 = vld [vmem:[#allocation2 + $0x140] sm:$0xf]
    %v101 = vld [vmem:[#allocation2 + $0x144] sm:$0xff]
    %v102 = vld [vmem:[#allocation2 + $0x14c] sm:$0xf]
    %v103 = vld [vmem:[#allocation2 + $0x150] sm:$0xff]
    %v104 = vld [vmem:[#allocation2 + $0x158] sm:$0xf]
    %v105 = vld [vmem:[#allocation2 + $0x15c] sm:$0xff]
    %v106 = vld [vmem:[#allocation2 + $0x164] sm:$0xf]
    %v107 = vld [vmem:[#allocation2 + $0x168] sm:$0xff]
    %v108 = vld [vmem:[#allocation2 + $0x170] sm:$0xf]
    %v109 = vld [vmem:[#allocation2 + $0x174] sm:$0xff]
    %v110 = vld [vmem:[#allocation2 + $0x17c] sm:$0xf]
    %v111 = vld [vmem:[#allocation2 + $0x180] sm:$0xff]
    %v112 = vld [vmem:[#allocation2 + $0x188] sm:$0xf]
    %v113 = vld [vmem:[#allocation2 + $0x18c] sm:$0xff]
    %v114 = vld [vmem:[#allocation2 + $0x194] sm:$0xf]
    %v115 = vld [vmem:[#allocation2 + $0x198] sm:$0xff]
    %v116 = vld [vmem:[#allocation2 + $0x1a0] sm:$0xf]
    %v117 = vld [vmem:[#allocation2 + $0x1a4] sm:$0xff]
    %v118 = vld [vmem:[#allocation2 + $0x1ac] sm:$0xf]
    %v119 = vld [vmem:[#allocation2 + $0x1b0] sm:$0xff]
    %v120 = vld [vmem:[#allocation2 + $0x1b8] sm:$0xf]
    %v121 = vld [vmem:[#allocation2 + $0x1bc] sm:$0xff]
    %v122 = vld [vmem:[#allocation2 + $0x1c4] sm:$0xf]
    %v123 = vld [vmem:[#allocation2 + $0x1c8] sm:$0xff]
    %v124 = vld [vmem:[#allocation2 + $0x1d0] sm:$0xf]
    %v125 = vld [vmem:[#allocation2 + $0x1d4] sm:$0xff]
    %v126 = vld [vmem:[#allocation2 + $0x1dc] sm:$0xf]
    %v127 = vld [vmem:[#allocation2 + $0x1e0] sm:$0xff]
    %v128 = vld [vmem:[#allocation2 + $0x1e8] sm:$0xf]
    %v129 = vld [vmem:[#allocation2 + $0x1ec] sm:$0xff]
    %v130 = vld [vmem:[#allocation2 + $0x1f4] sm:$0xf]
    %v131 = vld [vmem:[#allocation2 + $0x1f8] sm:$0xff]
    %v132 = vld [vmem:[#allocation2 + $0x200] sm:$0xf]
    %v133 = vld [vmem:[#allocation2 + $0x204] sm:$0xff]
    %v134 = vld [vmem:[#allocation2 + $0x20c] sm:$0xf]
    %v135 = vld [vmem:[#allocation2 + $0x210] sm:$0xff]
    %v136 = vld [vmem:[#allocation2 + $0x218] sm:$0xf]
    %v137 = vld [vmem:[#allocation2 + $0x21c] sm:$0xff]
    %v138 = vld [vmem:[#allocation2 + $0x224] sm:$0xf]
    %v139 = vld [vmem:[#allocation2 + $0x228] sm:$0xff]
    %v140 = vld [vmem:[#allocation2 + $0x230] sm:$0xf]
    %v141 = vld [vmem:[#allocation2 + $0x234] sm:$0xff]
    %v142 = vld [vmem:[#allocation2 + $0x23c] sm:$0xf]
    %v143 = vld [vmem:[#allocation2 + $0x240] sm:$0xff]
    %v144 = vld [vmem:[#allocation2 + $0x248] sm:$0xf]
    %v145 = vld [vmem:[#allocation2 + $0x24c] sm:$0xff]
    %v146 = vld [vmem:[#allocation2 + $0x254] sm:$0xf]
    %v147 = vld [vmem:[#allocation2 + $0x258] sm:$0xff]
    %v148 = vld [vmem:[#allocation2 + $0x260] sm:$0xf]
    %v149 = vld [vmem:[#allocation2 + $0x264] sm:$0xff]
    %v150 = vld [vmem:[#allocation2 + $0x26c] sm:$0xf]
    %v151 = vld [vmem:[#allocation2 + $0x270] sm:$0xff]
    %v152 = vld [vmem:[#allocation2 + $0x278] sm:$0xf]
    %v153 = vld [vmem:[#allocation2 + $0x27c] sm:$0xff]
    %v154 = vld [vmem:[#allocation2 + $0x284] sm:$0xf]
    %v155 = vld [vmem:[#allocation2 + $0x288] sm:$0xff]
    %v156 = vld [vmem:[#allocation2 + $0x290] sm:$0xf]
    %v157 = vld [vmem:[#allocation2 + $0x294] sm:$0xff]
    %v158 = vld [vmem:[#allocation2 + $0x29c] sm:$0xf]
    %v159 = vld [vmem:[#allocation2 + $0x2a0] sm:$0xff]
    %v160 = vld [vmem:[#allocation2 + $0x2a8] sm:$0xf]
    %v161 = vld [vmem:[#allocation2 + $0x2ac] sm:$0xff]
    %v162 = vld [vmem:[#allocation2 + $0x2b4] sm:$0xf]
    %v163 = vld [vmem:[#allocation2 + $0x2b8] sm:$0xff]
    %v164 = vld [vmem:[#allocation2 + $0x2c0] sm:$0xf]
    %v165 = vld [vmem:[#allocation2 + $0x2c4] sm:$0xff]
    %v166 = vld [vmem:[#allocation2 + $0x2cc] sm:$0xf]
    %v167 = vld [vmem:[#allocation2 + $0x2d0] sm:$0xff]
    %v168 = vld [vmem:[#allocation2 + $0x2d8] sm:$0xf]
    %v169 = vld [vmem:[#allocation2 + $0x2dc] sm:$0xff]
    %v170 = vld [vmem:[#allocation2 + $0x2e4] sm:$0xf]
    %v171 = vld [vmem:[#allocation2 + $0x2e8] sm:$0xff]
    %v172 = vld [vmem:[#allocation2 + $0x2f0] sm:$0xf]
    %v173 = vld [vmem:[#allocation2 + $0x2f4] sm:$0xff]
    %v174 = vld [vmem:[#allocation2 + $0x2fc] sm:$0xf]
    %v175 = vld [vmem:[#allocation5] sm:$0xf]
    %v176 = vld [vmem:[#allocation5 + $0x4] sm:$0xf]
    %v177 = vld [vmem:[#allocation5 + $0x8] sm:$0xf]
    %v178 = vld [vmem:[#allocation5 + $0xc] sm:$0xf]
    %v179 = vld [vmem:[#allocation5 + $0x10] sm:$0xf]
    %v180 = vld [vmem:[#allocation5 + $0x14] sm:$0xf]
    %v181 = vld [vmem:[#allocation5 + $0x18] sm:$0xf]
    %v182 = vld [vmem:[#allocation5 + $0x1c] sm:$0xf]
    %v183 = vld [vmem:[#allocation5 + $0x20] sm:$0xf]
    %v184 = vld [vmem:[#allocation5 + $0x24] sm:$0xf]
    %v185 = vld [vmem:[#allocation5 + $0x28] sm:$0xf]
    %v186 = vld [vmem:[#allocation5 + $0x2c] sm:$0xf]
    %v187 = vld [vmem:[#allocation5 + $0x30] sm:$0xf]
    %v188 = vld [vmem:[#allocation5 + $0x34] sm:$0xf]
    %v189 = vld [vmem:[#allocation5 + $0x38] sm:$0xf]
    %v190 = vld [vmem:[#allocation5 + $0x3c] sm:$0xf]
    %v191 = vld [vmem:[#allocation5 + $0x40] sm:$0xf]
    %v192 = vld [vmem:[#allocation5 + $0x44] sm:$0xf]
    %v193 = vld [vmem:[#allocation5 + $0x48] sm:$0xf]
    %v194 = vld [vmem:[#allocation5 + $0x4c] sm:$0xf]
    %v195 = vld [vmem:[#allocation5 + $0x50] sm:$0xf]
    %v196 = vld [vmem:[#allocation5 + $0x54] sm:$0xf]
    %v197 = vld [vmem:[#allocation5 + $0x58] sm:$0xf]
    %v198 = vld [vmem:[#allocation5 + $0x5c] sm:$0xf]
    %v199 = vld [vmem:[#allocation5 + $0x60] sm:$0xf]
    %v200 = vld [vmem:[#allocation5 + $0x64] sm:$0xf]
    %v201 = vld [vmem:[#allocation5 + $0x68] sm:$0xf]
    %v202 = vld [vmem:[#allocation5 + $0x6c] sm:$0xf]
    %v203 = vld [vmem:[#allocation5 + $0x70] sm:$0xf]
    %v204 = vld [vmem:[#allocation5 + $0x74] sm:$0xf]
    %v205 = vld [vmem:[#allocation5 + $0x78] sm:$0xf]
    %v206 = vld [vmem:[#allocation5 + $0x7c] sm:$0xf]
    %v207 = vld [vmem:[#allocation5 + $0x80] sm:$0xf]
    %v208 = vld [vmem:[#allocation5 + $0x84] sm:$0xf]
    %v209 = vld [vmem:[#allocation5 + $0x88] sm:$0xf]
    %v210 = vld [vmem:[#allocation5 + $0x8c] sm:$0xf]
    %v211 = vld [vmem:[#allocation5 + $0x90] sm:$0xf]
    %v212 = vld [vmem:[#allocation5 + $0x94] sm:$0xf]
    %v213 = vld [vmem:[#allocation5 + $0x98] sm:$0xf]
    %v214 = vld [vmem:[#allocation5 + $0x9c] sm:$0xf]
    %v215 = vld [vmem:[#allocation5 + $0xa0] sm:$0xf]
    %v216 = vld [vmem:[#allocation5 + $0xa4] sm:$0xf]
    %v217 = vld [vmem:[#allocation5 + $0xa8] sm:$0xf]
    %v218 = vld [vmem:[#allocation5 + $0xac] sm:$0xf]
    %v219 = vld [vmem:[#allocation5 + $0xb0] sm:$0xf]
    %v220 = vld [vmem:[#allocation5 + $0xb4] sm:$0xf]
    %v221 = vld [vmem:[#allocation5 + $0xb8] sm:$0xf]
    %v222 = vld [vmem:[#allocation5 + $0xbc] sm:$0xf]
    %v351 = vunpack.c.l.b16 %v47
    %v352 = vunpack.c.h.b16 %v47
    %v353 = vunpack.c.l.b16 %v48
    %v354 = vunpack.c.l.b16 %v49
    %v355 = vunpack.c.h.b16 %v49
    %v356 = vunpack.c.l.b16 %v50
    %v357 = vunpack.c.l.b16 %v51
    %v358 = vunpack.c.h.b16 %v51
    %v359 = vunpack.c.l.b16 %v52
    %v360 = vunpack.c.l.b16 %v53
    %v361 = vunpack.c.h.b16 %v53
    %v362 = vunpack.c.l.b16 %v54
    %v363 = vunpack.c.l.b16 %v55
    %v364 = vunpack.c.h.b16 %v55
    %v365 = vunpack.c.l.b16 %v56
    %v366 = vunpack.c.l.b16 %v57
    %v367 = vunpack.c.h.b16 %v57
    %v368 = vunpack.c.l.b16 %v58
    %v369 = vunpack.c.l.b16 %v59
    %v370 = vunpack.c.h.b16 %v59
    %v371 = vunpack.c.l.b16 %v60
    %v372 = vunpack.c.l.b16 %v61
    %v373 = vunpack.c.h.b16 %v61
    %v374 = vunpack.c.l.b16 %v62
    %v375 = vunpack.c.l.b16 %v63
    %v376 = vunpack.c.h.b16 %v63
    %v377 = vunpack.c.l.b16 %v64
    %v378 = vunpack.c.l.b16 %v65
    %v379 = vunpack.c.h.b16 %v65
    %v380 = vunpack.c.l.b16 %v66
    %v381 = vunpack.c.l.b16 %v67
    %v382 = vunpack.c.h.b16 %v67
    %v383 = vunpack.c.l.b16 %v68
    %v384 = vunpack.c.l.b16 %v69
    %v385 = vunpack.c.h.b16 %v69
    %v386 = vunpack.c.l.b16 %v70
    %v387 = vunpack.c.l.b16 %v71
    %v388 = vunpack.c.h.b16 %v71
    %v389 = vunpack.c.l.b16 %v72
    %v390 = vunpack.c.l.b16 %v73
    %v391 = vunpack.c.h.b16 %v73
    %v392 = vunpack.c.l.b16 %v74
    %v393 = vunpack.c.l.b16 %v75
    %v394 = vunpack.c.h.b16 %v75
    %v395 = vunpack.c.l.b16 %v76
    %v396 = vunpack.c.l.b16 %v77
    %v397 = vunpack.c.h.b16 %v77
    %v398 = vunpack.c.l.b16 %v78
    %v399 = vunpack.c.l.b16 %v79
    %v400 = vunpack.c.h.b16 %v79
    %v401 = vunpack.c.l.b16 %v80
    %v402 = vunpack.c.l.b16 %v81
    %v403 = vunpack.c.h.b16 %v81
    %v404 = vunpack.c.l.b16 %v82
    %v405 = vunpack.c.l.b16 %v83
    %v406 = vunpack.c.h.b16 %v83
    %v407 = vunpack.c.l.b16 %v84
    %v408 = vunpack.c.l.b16 %v85
    %v409 = vunpack.c.h.b16 %v85
    %v410 = vunpack.c.l.b16 %v86
    %v411 = vunpack.c.l.b16 %v87
    %v412 = vunpack.c.h.b16 %v87
    %v413 = vunpack.c.l.b16 %v88
    %v414 = vunpack.c.l.b16 %v89
    %v415 = vunpack.c.h.b16 %v89
    %v416 = vunpack.c.l.b16 %v90
    %v417 = vunpack.c.l.b16 %v91
    %v418 = vunpack.c.h.b16 %v91
    %v419 = vunpack.c.l.b16 %v92
    %v420 = vunpack.c.l.b16 %v93
    %v421 = vunpack.c.h.b16 %v93
    %v422 = vunpack.c.l.b16 %v94
    %v423 = vunpack.c.l.b16 %v95
    %v424 = vunpack.c.h.b16 %v95
    %v425 = vunpack.c.l.b16 %v96
    %v426 = vunpack.c.l.b16 %v97
    %v427 = vunpack.c.h.b16 %v97
    %v428 = vunpack.c.l.b16 %v98
    %v429 = vunpack.c.l.b16 %v99
    %v430 = vunpack.c.h.b16 %v99
    %v431 = vunpack.c.l.b16 %v100
    %v432 = vunpack.c.l.b16 %v101
    %v433 = vunpack.c.h.b16 %v101
    %v434 = vunpack.c.l.b16 %v102
    %v435 = vunpack.c.l.b16 %v103
    %v436 = vunpack.c.h.b16 %v103
    %v437 = vunpack.c.l.b16 %v104
    %v438 = vunpack.c.l.b16 %v105
    %v439 = vunpack.c.h.b16 %v105
    %v440 = vunpack.c.l.b16 %v106
    %v441 = vunpack.c.l.b16 %v107
    %v442 = vunpack.c.h.b16 %v107
    %v443 = vunpack.c.l.b16 %v108
    %v444 = vunpack.c.l.b16 %v109
    %v445 = vunpack.c.h.b16 %v109
    %v446 = vunpack.c.l.b16 %v110
    %v447 = vunpack.c.l.b16 %v111
    %v448 = vunpack.c.h.b16 %v111
    %v449 = vunpack.c.l.b16 %v112
    %v450 = vunpack.c.l.b16 %v113
    %v451 = vunpack.c.h.b16 %v113
    %v452 = vunpack.c.l.b16 %v114
    %v453 = vunpack.c.l.b16 %v115
    %v454 = vunpack.c.h.b16 %v115
    %v455 = vunpack.c.l.b16 %v116
    %v456 = vunpack.c.l.b16 %v117
    %v457 = vunpack.c.h.b16 %v117
    %v458 = vunpack.c.l.b16 %v118
    %v459 = vunpack.c.l.b16 %v119
    %v460 = vunpack.c.h.b16 %v119
    %v461 = vunpack.c.l.b16 %v120
    %v462 = vunpack.c.l.b16 %v121
    %v463 = vunpack.c.h.b16 %v121
    %v464 = vunpack.c.l.b16 %v122
    %v465 = vunpack.c.l.b16 %v123
    %v466 = vunpack.c.h.b16 %v123
    %v467 = vunpack.c.l.b16 %v124
    %v468 = vunpack.c.l.b16 %v125
    %v469 = vunpack.c.h.b16 %v125
    %v470 = vunpack.c.l.b16 %v126
    %v471 = vunpack.c.l.b16 %v127
    %v472 = vunpack.c.h.b16 %v127
    %v473 = vunpack.c.l.b16 %v128
    %v474 = vunpack.c.l.b16 %v129
    %v475 = vunpack.c.h.b16 %v129
    %v476 = vunpack.c.l.b16 %v130
    %v477 = vunpack.c.l.b16 %v131
    %v478 = vunpack.c.h.b16 %v131
    %v479 = vunpack.c.l.b16 %v132
    %v480 = vunpack.c.l.b16 %v133
    %v481 = vunpack.c.h.b16 %v133
    %v482 = vunpack.c.l.b16 %v134
    %v483 = vunpack.c.l.b16 %v135
    %v484 = vunpack.c.h.b16 %v135
    %v485 = vunpack.c.l.b16 %v136
    %v486 = vunpack.c.l.b16 %v137
    %v487 = vunpack.c.h.b16 %v137
    %v488 = vunpack.c.l.b16 %v138
    %v489 = vunpack.c.l.b16 %v139
    %v490 = vunpack.c.h.b16 %v139
    %v491 = vunpack.c.l.b16 %v140
    %v492 = vunpack.c.l.b16 %v141
    %v493 = vunpack.c.h.b16 %v141
    %v494 = vunpack.c.l.b16 %v142
    %v495 = vunpack.c.l.b16 %v143
    %v496 = vunpack.c.h.b16 %v143
    %v497 = vunpack.c.l.b16 %v144
    %v498 = vunpack.c.l.b16 %v145
    %v499 = vunpack.c.h.b16 %v145
    %v500 = vunpack.c.l.b16 %v146
    %v501 = vunpack.c.l.b16 %v147
    %v502 = vunpack.c.h.b16 %v147
    %v503 = vunpack.c.l.b16 %v148
    %v504 = vunpack.c.l.b16 %v149
    %v505 = vunpack.c.h.b16 %v149
    %v506 = vunpack.c.l.b16 %v150
    %v507 = vunpack.c.l.b16 %v151
    %v508 = vunpack.c.h.b16 %v151
    %v509 = vunpack.c.l.b16 %v152
    %v510 = vunpack.c.l.b16 %v153
    %v511 = vunpack.c.h.b16 %v153
    %v512 = vunpack.c.l.b16 %v154
    %v513 = vunpack.c.l.b16 %v155
    %v514 = vunpack.c.h.b16 %v155
    %v515 = vunpack.c.l.b16 %v156
    %v516 = vunpack.c.l.b16 %v157
    %v517 = vunpack.c.h.b16 %v157
    %v518 = vunpack.c.l.b16 %v158
    %v519 = vunpack.c.l.b16 %v159
    %v520 = vunpack.c.h.b16 %v159
    %v521 = vunpack.c.l.b16 %v160
    %v522 = vunpack.c.l.b16 %v161
    %v523 = vunpack.c.h.b16 %v161
    %v524 = vunpack.c.l.b16 %v162
    %v525 = vunpack.c.l.b16 %v163
    %v526 = vunpack.c.h.b16 %v163
    %v527 = vunpack.c.l.b16 %v164
    %v528 = vunpack.c.l.b16 %v165
    %v529 = vunpack.c.h.b16 %v165
    %v530 = vunpack.c.l.b16 %v166
    %v531 = vunpack.c.l.b16 %v167
    %v532 = vunpack.c.h.b16 %v167
    %v533 = vunpack.c.l.b16 %v168
    %v534 = vunpack.c.l.b16 %v169
    %v535 = vunpack.c.h.b16 %v169
    %v536 = vunpack.c.l.b16 %v170
    %v537 = vunpack.c.l.b16 %v171
    %v538 = vunpack.c.h.b16 %v171
    %v539 = vunpack.c.l.b16 %v172
    %v540 = vunpack.c.l.b16 %v173
    %v541 = vunpack.c.h.b16 %v173
    %v542 = vunpack.c.l.b16 %v174
    %v543 = vpack.c.b16 %v354, %v351
    %v544 = vpack.c.b16 %v355, %v352
    %v545 = vpack.c.b16 %v356, %v353
    %v546 = vpack.c.b16 %v360, %v357
    %v547 = vpack.c.b16 %v361, %v358
    %v548 = vpack.c.b16 %v362, %v359
    %v549 = vpack.c.b16 %v366, %v363
    %v550 = vpack.c.b16 %v367, %v364
    %v551 = vpack.c.b16 %v368, %v365
    %v552 = vpack.c.b16 %v372, %v369
    %v553 = vpack.c.b16 %v373, %v370
    %v554 = vpack.c.b16 %v374, %v371
    %v555 = vpack.c.b16 %v378, %v375
    %v556 = vpack.c.b16 %v379, %v376
    %v557 = vpack.c.b16 %v380, %v377
    %v558 = vpack.c.b16 %v384, %v381
    %v559 = vpack.c.b16 %v385, %v382
    %v560 = vpack.c.b16 %v386, %v383
    %v561 = vpack.c.b16 %v390, %v387
    %v562 = vpack.c.b16 %v391, %v388
    %v563 = vpack.c.b16 %v392, %v389
    %v564 = vpack.c.b16 %v396, %v393
    %v565 = vpack.c.b16 %v397, %v394
    %v566 = vpack.c.b16 %v398, %v395
    %v567 = vpack.c.b16 %v402, %v399
    %v568 = vpack.c.b16 %v403, %v400
    %v569 = vpack.c.b16 %v404, %v401
    %v570 = vpack.c.b16 %v408, %v405
    %v571 = vpack.c.b16 %v409, %v406
    %v572 = vpack.c.b16 %v410, %v407
    %v573 = vpack.c.b16 %v414, %v411
    %v574 = vpack.c.b16 %v415, %v412
    %v575 = vpack.c.b16 %v416, %v413
    %v576 = vpack.c.b16 %v420, %v417
    %v577 = vpack.c.b16 %v421, %v418
    %v578 = vpack.c.b16 %v422, %v419
    %v579 = vpack.c.b16 %v426, %v423
    %v580 = vpack.c.b16 %v427, %v424
    %v581 = vpack.c.b16 %v428, %v425
    %v582 = vpack.c.b16 %v432, %v429
    %v583 = vpack.c.b16 %v433, %v430
    %v584 = vpack.c.b16 %v434, %v431
    %v585 = vpack.c.b16 %v438, %v435
    %v586 = vpack.c.b16 %v439, %v436
    %v587 = vpack.c.b16 %v440, %v437
    %v588 = vpack.c.b16 %v444, %v441
    %v589 = vpack.c.b16 %v445, %v442
    %v590 = vpack.c.b16 %v446, %v443
    %v591 = vpack.c.b16 %v450, %v447
    %v592 = vpack.c.b16 %v451, %v448
    %v593 = vpack.c.b16 %v452, %v449
    %v594 = vpack.c.b16 %v456, %v453
    %v595 = vpack.c.b16 %v457, %v454
    %v596 = vpack.c.b16 %v458, %v455
    %v597 = vpack.c.b16 %v462, %v459
    %v598 = vpack.c.b16 %v463, %v460
    %v599 = vpack.c.b16 %v464, %v461
    %v600 = vpack.c.b16 %v468, %v465
    %v601 = vpack.c.b16 %v469, %v466
    %v602 = vpack.c.b16 %v470, %v467
    %v603 = vpack.c.b16 %v474, %v471
    %v604 = vpack.c.b16 %v475, %v472
    %v605 = vpack.c.b16 %v476, %v473
    %v606 = vpack.c.b16 %v480, %v477
    %v607 = vpack.c.b16 %v481, %v478
    %v608 = vpack.c.b16 %v482, %v479
    %v609 = vpack.c.b16 %v486, %v483
    %v610 = vpack.c.b16 %v487, %v484
    %v611 = vpack.c.b16 %v488, %v485
    %v612 = vpack.c.b16 %v492, %v489
    %v613 = vpack.c.b16 %v493, %v490
    %v614 = vpack.c.b16 %v494, %v491
    %v615 = vpack.c.b16 %v498, %v495
    %v616 = vpack.c.b16 %v499, %v496
    %v617 = vpack.c.b16 %v500, %v497
    %v618 = vpack.c.b16 %v504, %v501
    %v619 = vpack.c.b16 %v505, %v502
    %v620 = vpack.c.b16 %v506, %v503
    %v621 = vpack.c.b16 %v510, %v507
    %v622 = vpack.c.b16 %v511, %v508
    %v623 = vpack.c.b16 %v512, %v509
    %v624 = vpack.c.b16 %v516, %v513
    %v625 = vpack.c.b16 %v517, %v514
    %v626 = vpack.c.b16 %v518, %v515
    %v627 = vpack.c.b16 %v522, %v519
    %v628 = vpack.c.b16 %v523, %v520
    %v629 = vpack.c.b16 %v524, %v521
    %v630 = vpack.c.b16 %v528, %v525
    %v631 = vpack.c.b16 %v529, %v526
    %v632 = vpack.c.b16 %v530, %v527
    %v633 = vpack.c.b16 %v534, %v531
    %v634 = vpack.c.b16 %v535, %v532
    %v635 = vpack.c.b16 %v536, %v533
    %v636 = vpack.c.b16 %v540, %v537
    %v637 = vpack.c.b16 %v541, %v538
    %v638 = vpack.c.b16 %v542, %v539
    %v783 = vunpack.c.l.b16 %v175
    %v784 = vunpack.c.l.b16 %v176
    %v785 = vunpack.c.l.b16 %v177
    %v786 = vunpack.c.l.b16 %v178
    %v787 = vunpack.c.l.b16 %v179
    %v788 = vunpack.c.l.b16 %v180
    %v789 = vunpack.c.l.b16 %v181
    %v790 = vunpack.c.l.b16 %v182
    %v791 = vunpack.c.l.b16 %v183
    %v792 = vunpack.c.l.b16 %v184
    %v793 = vunpack.c.l.b16 %v185
    %v794 = vunpack.c.l.b16 %v186
    %v795 = vunpack.c.l.b16 %v187
    %v796 = vunpack.c.l.b16 %v188
    %v797 = vunpack.c.l.b16 %v189
    %v798 = vunpack.c.l.b16 %v190
    %v799 = vunpack.c.l.b16 %v191
    %v800 = vunpack.c.l.b16 %v192
    %v801 = vunpack.c.l.b16 %v193
    %v802 = vunpack.c.l.b16 %v194
    %v803 = vunpack.c.l.b16 %v195
    %v804 = vunpack.c.l.b16 %v196
    %v805 = vunpack.c.l.b16 %v197
    %v806 = vunpack.c.l.b16 %v198
    %v807 = vunpack.c.l.b16 %v199
    %v808 = vunpack.c.l.b16 %v200
    %v809 = vunpack.c.l.b16 %v201
    %v810 = vunpack.c.l.b16 %v202
    %v811 = vunpack.c.l.b16 %v203
    %v812 = vunpack.c.l.b16 %v204
    %v813 = vunpack.c.l.b16 %v205
    %v814 = vunpack.c.l.b16 %v206
    %v815 = vunpack.c.l.b16 %v207
    %v816 = vunpack.c.l.b16 %v208
    %v817 = vunpack.c.l.b16 %v209
    %v818 = vunpack.c.l.b16 %v210
    %v819 = vunpack.c.l.b16 %v211
    %v820 = vunpack.c.l.b16 %v212
    %v821 = vunpack.c.l.b16 %v213
    %v822 = vunpack.c.l.b16 %v214
    %v823 = vunpack.c.l.b16 %v215
    %v824 = vunpack.c.l.b16 %v216
    %v825 = vunpack.c.l.b16 %v217
    %v826 = vunpack.c.l.b16 %v218
    %v827 = vunpack.c.l.b16 %v219
    %v828 = vunpack.c.l.b16 %v220
    %v829 = vunpack.c.l.b16 %v221
    %v830 = vunpack.c.l.b16 %v222
    %v831 = vpack.c.b16 %v784, %v783
    %v832 = vpack.c.b16 %v786, %v785
    %v833 = vpack.c.b16 %v788, %v787
    %v834 = vpack.c.b16 %v790, %v789
    %v835 = vpack.c.b16 %v792, %v791
    %v836 = vpack.c.b16 %v794, %v793
    %v837 = vpack.c.b16 %v796, %v795
    %v838 = vpack.c.b16 %v798, %v797
    %v839 = vpack.c.b16 %v800, %v799
    %v840 = vpack.c.b16 %v802, %v801
    %v841 = vpack.c.b16 %v804, %v803
    %v842 = vpack.c.b16 %v806, %v805
    %v843 = vpack.c.b16 %v808, %v807
    %v844 = vpack.c.b16 %v810, %v809
    %v845 = vpack.c.b16 %v812, %v811
    %v846 = vpack.c.b16 %v814, %v813
    %v847 = vpack.c.b16 %v816, %v815
    %v848 = vpack.c.b16 %v818, %v817
    %v849 = vpack.c.b16 %v820, %v819
    %v850 = vpack.c.b16 %v822, %v821
    %v851 = vpack.c.b16 %v824, %v823
    %v852 = vpack.c.b16 %v826, %v825
    %v853 = vpack.c.b16 %v828, %v827
    %v854 = vpack.c.b16 %v830, %v829
    %879 = vmatprep.subr.bf16.mxu0 0
    %880 = vmatpush1.bf16.msra.mxu0 %v831
    %881 = vmatprep.subr.bf16.mxu0 0
    %882 = vmatpush1.bf16.msra.mxu0 %v832
    %883 = vmatprep.subr.bf16.mxu0 0
    %884 = vmatpush1.bf16.msra.mxu0 %v833
    %885 = vmatprep.subr.bf16.mxu0 0
    %886 = vmatpush1.bf16.msra.mxu0 %v834
    %887 = vmatprep.subr.bf16.mxu0 0
    %888 = vmatpush1.bf16.msra.mxu0 %v835
    %889 = vmatprep.subr.bf16.mxu0 0
    %890 = vmatpush1.bf16.msra.mxu0 %v836
    %891 = vmatprep.subr.bf16.mxu0 0
    %892 = vmatpush1.bf16.msra.mxu0 %v837
    %893 = vmatprep.subr.bf16.mxu0 0
    %894 = vmatpush1.bf16.msra.mxu0 %v838
    %895 = vmatprep.subr.bf16.mxu0 0
    %896 = vmatpush1.bf16.msra.mxu0 %v839
    %897 = vmatprep.subr.bf16.mxu0 0
    %898 = vmatpush1.bf16.msra.mxu0 %v840
    %899 = vmatprep.subr.bf16.mxu0 0
    %900 = vmatpush1.bf16.msra.mxu0 %v841
    %901 = vmatprep.subr.bf16.mxu0 0
    %902 = vmatpush1.bf16.msra.mxu0 %v842
    %903 = vmatprep.subr.bf16.mxu0 0
    %904 = vmatpush1.bf16.msra.mxu0 %v843
    %905 = vmatprep.subr.bf16.mxu0 0
    %906 = vmatpush1.bf16.msra.mxu0 %v844
    %907 = vmatprep.subr.bf16.mxu0 0
    %908 = vmatpush1.bf16.msra.mxu0 %v845
    %909 = vmatprep.subr.bf16.mxu0 0
    %910 = vmatpush1.bf16.msra.mxu0 %v846
    %911 = vmatprep.mubr.bf16.mxu0 %v544
    %912 = vmatmul.mubr.bf16.gmra.mrb[0].mxu0 %v543
    %v913 = vpop.f32.mrb[0].mxu0
    %v914 = vadd.f32 0.0, %v913
    %v915 = vpop.f32.mrb[0].mxu0
    %v916 = vpop.f32.mrb[0].mxu0
    %v917 = vadd.f32 0.0, %v916
    %v918 = vpop.f32.mrb[0].mxu0
    %919 = vmatprep.mubr.bf16.mxu0 %v547
    %920 = vmatmul.mubr.bf16.gmra.mrb[0].mxu0 %v546
    %v921 = vpop.f32.mrb[0].mxu0
    %v922 = vadd.f32 0.0, %v921
    %v923 = vpop.f32.mrb[0].mxu0
    %v924 = vpop.f32.mrb[0].mxu0
    %v925 = vadd.f32 0.0, %v924
    %v926 = vpop.f32.mrb[0].mxu0
    %927 = vmatprep.mubr.bf16.mxu0 %v550
    %928 = vmatmul.mubr.bf16.gmra.mrb[0].mxu0 %v549
    %v929 = vpop.f32.mrb[0].mxu0
    %v930 = vadd.f32 0.0, %v929
    %v931 = vpop.f32.mrb[0].mxu0
    %v932 = vpop.f32.mrb[0].mxu0
    %v933 = vadd.f32 0.0, %v932
    %v934 = vpop.f32.mrb[0].mxu0
    %935 = vmatprep.mubr.bf16.mxu0 %v553
    %936 = vmatmul.mubr.bf16.gmra.mrb[0].mxu0 %v552
    %v937 = vpop.f32.mrb[0].mxu0
    %v938 = vadd.f32 0.0, %v937
    %v939 = vpop.f32.mrb[0].mxu0
    %v940 = vpop.f32.mrb[0].mxu0
    %v941 = vadd.f32 0.0, %v940
    %v942 = vpop.f32.mrb[0].mxu0
    %943 = vmatprep.mubr.bf16.mxu0 %v556
    %944 = vmatmul.mubr.bf16.gmra.mrb[0].mxu0 %v555
    %v945 = vpop.f32.mrb[0].mxu0
    %v946 = vadd.f32 0.0, %v945
    %v947 = vpop.f32.mrb[0].mxu0
    %v948 = vpop.f32.mrb[0].mxu0
    %v949 = vadd.f32 0.0, %v948
    %v950 = vpop.f32.mrb[0].mxu0
    %951 = vmatprep.mubr.bf16.mxu0 %v559
    %952 = vmatmul.mubr.bf16.gmra.mrb[0].mxu0 %v558
    %v953 = vpop.f32.mrb[0].mxu0
    %v954 = vadd.f32 0.0, %v953
    %v955 = vpop.f32.mrb[0].mxu0
    %v956 = vpop.f32.mrb[0].mxu0
    %v957 = vadd.f32 0.0, %v956
    %v958 = vpop.f32.mrb[0].mxu0
    %959 = vmatprep.mubr.bf16.mxu0 %v562
    %960 = vmatmul.mubr.bf16.gmra.mrb[0].mxu0 %v561
    %v961 = vpop.f32.mrb[0].mxu0
    %v962 = vadd.f32 0.0, %v961
    %v963 = vpop.f32.mrb[0].mxu0
    %v964 = vpop.f32.mrb[0].mxu0
    %v965 = vadd.f32 0.0, %v964
    %v966 = vpop.f32.mrb[0].mxu0
    %967 = vmatprep.mubr.bf16.mxu0 %v565
    %968 = vmatmul.mubr.bf16.gmra.mrb[0].mxu0 %v564
    %v969 = vpop.f32.mrb[0].mxu0
    %v970 = vadd.f32 0.0, %v969
    %v971 = vpop.f32.mrb[0].mxu0
    %v972 = vpop.f32.mrb[0].mxu0
    %v973 = vadd.f32 0.0, %v972
    %v974 = vpop.f32.mrb[0].mxu0
    %975 = vmatprep.mubr.bf16.mxu0 %v568
    %976 = vmatmul.mubr.bf16.gmra.mrb[0].mxu0 %v567
    %v977 = vpop.f32.mrb[0].mxu0
    %v978 = vadd.f32 0.0, %v977
    %v979 = vpop.f32.mrb[0].mxu0
    %v980 = vpop.f32.mrb[0].mxu0
    %v981 = vadd.f32 0.0, %v980
    %v982 = vpop.f32.mrb[0].mxu0
    %983 = vmatprep.mubr.bf16.mxu0 %v571
    %984 = vmatmul.mubr.bf16.gmra.mrb[0].mxu0 %v570
    %v985 = vpop.f32.mrb[0].mxu0
    %v986 = vadd.f32 0.0, %v985
    %v987 = vpop.f32.mrb[0].mxu0
    %v988 = vpop.f32.mrb[0].mxu0
    %v989 = vadd.f32 0.0, %v988
    %v990 = vpop.f32.mrb[0].mxu0
    %991 = vmatprep.mubr.bf16.mxu0 %v574
    %992 = vmatmul.mubr.bf16.gmra.mrb[0].mxu0 %v573
    %v993 = vpop.f32.mrb[0].mxu0
    %v994 = vadd.f32 0.0, %v993
    %v995 = vpop.f32.mrb[0].mxu0
    %v996 = vpop.f32.mrb[0].mxu0
    %v997 = vadd.f32 0.0, %v996
    %v998 = vpop.f32.mrb[0].mxu0
    %999 = vmatprep.mubr.bf16.mxu0 %v577
    %1000 = vmatmul.mubr.bf16.gmra.mrb[0].mxu0 %v576
    %v1001 = vpop.f32.mrb[0].mxu0
    %v1002 = vadd.f32 0.0, %v1001
    %v1003 = vpop.f32.mrb[0].mxu0
    %v1004 = vpop.f32.mrb[0].mxu0
    %v1005 = vadd.f32 0.0, %v1004
    %v1006 = vpop.f32.mrb[0].mxu0
    %1007 = vmatprep.mubr.bf16.mxu0 %v580
    %1008 = vmatmul.mubr.bf16.gmra.mrb[0].mxu0 %v579
    %v1009 = vpop.f32.mrb[0].mxu0
    %v1010 = vadd.f32 0.0, %v1009
    %v1011 = vpop.f32.mrb[0].mxu0
    %v1012 = vpop.f32.mrb[0].mxu0
    %v1013 = vadd.f32 0.0, %v1012
    %v1014 = vpop.f32.mrb[0].mxu0
    %1015 = vmatprep.mubr.bf16.mxu0 %v583
    %1016 = vmatmul.mubr.bf16.gmra.mrb[0].mxu0 %v582
    %v1017 = vpop.f32.mrb[0].mxu0
    %v1018 = vadd.f32 0.0, %v1017
    %v1019 = vpop.f32.mrb[0].mxu0
    %v1020 = vpop.f32.mrb[0].mxu0
    %v1021 = vadd.f32 0.0, %v1020
    %v1022 = vpop.f32.mrb[0].mxu0
    %1023 = vmatprep.mubr.bf16.mxu0 %v586
    %1024 = vmatmul.mubr.bf16.gmra.mrb[0].mxu0 %v585
    %v1025 = vpop.f32.mrb[0].mxu0
    %v1026 = vadd.f32 0.0, %v1025
    %v1027 = vpop.f32.mrb[0].mxu0
    %v1028 = vpop.f32.mrb[0].mxu0
    %v1029 = vadd.f32 0.0, %v1028
    %v1030 = vpop.f32.mrb[0].mxu0
    %1031 = vmatprep.mubr.bf16.mxu0 %v589
    %1032 = vmatmul.mubr.bf16.gmra.mrb[0].mxu0 %v588
    %v1033 = vpop.f32.mrb[0].mxu0
    %v1034 = vadd.f32 0.0, %v1033
    %v1035 = vpop.f32.mrb[0].mxu0
    %v1036 = vpop.f32.mrb[0].mxu0
    %v1037 = vadd.f32 0.0, %v1036
    %v1038 = vpop.f32.mrb[0].mxu0
    %1039 = vmatprep.mubr.bf16.mxu0 %v592
    %1040 = vmatmul.mubr.bf16.gmra.mrb[0].mxu0 %v591
    %v1041 = vpop.f32.mrb[0].mxu0
    %v1042 = vadd.f32 0.0, %v1041
    %v1043 = vpop.f32.mrb[0].mxu0
    %v1044 = vpop.f32.mrb[0].mxu0
    %v1045 = vadd.f32 0.0, %v1044
    %v1046 = vpop.f32.mrb[0].mxu0
    %1047 = vmatprep.mubr.bf16.mxu0 %v595
    %1048 = vmatmul.mubr.bf16.gmra.mrb[0].mxu0 %v594
    %v1049 = vpop.f32.mrb[0].mxu0
    %v1050 = vadd.f32 0.0, %v1049
    %v1051 = vpop.f32.mrb[0].mxu0
    %v1052 = vpop.f32.mrb[0].mxu0
    %v1053 = vadd.f32 0.0, %v1052
    %v1054 = vpop.f32.mrb[0].mxu0
    %1055 = vmatprep.mubr.bf16.mxu0 %v598
    %1056 = vmatmul.mubr.bf16.gmra.mrb[0].mxu0 %v597
    %v1057 = vpop.f32.mrb[0].mxu0
    %v1058 = vadd.f32 0.0, %v1057
    %v1059 = vpop.f32.mrb[0].mxu0
    %v1060 = vpop.f32.mrb[0].mxu0
    %v1061 = vadd.f32 0.0, %v1060
    %v1062 = vpop.f32.mrb[0].mxu0
    %1063 = vmatprep.mubr.bf16.mxu0 %v601
    %1064 = vmatmul.mubr.bf16.gmra.mrb[0].mxu0 %v600
    %v1065 = vpop.f32.mrb[0].mxu0
    %v1066 = vadd.f32 0.0, %v1065
    %v1067 = vpop.f32.mrb[0].mxu0
    %v1068 = vpop.f32.mrb[0].mxu0
    %v1069 = vadd.f32 0.0, %v1068
    %v1070 = vpop.f32.mrb[0].mxu0
    %1071 = vmatprep.mubr.bf16.mxu0 %v604
    %1072 = vmatmul.mubr.bf16.gmra.mrb[0].mxu0 %v603
    %v1073 = vpop.f32.mrb[0].mxu0
    %v1074 = vadd.f32 0.0, %v1073
    %v1075 = vpop.f32.mrb[0].mxu0
    %v1076 = vpop.f32.mrb[0].mxu0
    %v1077 = vadd.f32 0.0, %v1076
    %v1078 = vpop.f32.mrb[0].mxu0
    %1079 = vmatprep.mubr.bf16.mxu0 %v607
    %1080 = vmatmul.mubr.bf16.gmra.mrb[0].mxu0 %v606
    %v1081 = vpop.f32.mrb[0].mxu0
    %v1082 = vadd.f32 0.0, %v1081
    %v1083 = vpop.f32.mrb[0].mxu0
    %v1084 = vpop.f32.mrb[0].mxu0
    %v1085 = vadd.f32 0.0, %v1084
    %v1086 = vpop.f32.mrb[0].mxu0
    %1087 = vmatprep.mubr.bf16.mxu0 %v610
    %1088 = vmatmul.mubr.bf16.gmra.mrb[0].mxu0 %v609
    %v1089 = vpop.f32.mrb[0].mxu0
    %v1090 = vadd.f32 0.0, %v1089
    %v1091 = vpop.f32.mrb[0].mxu0
    %v1092 = vpop.f32.mrb[0].mxu0
    %v1093 = vadd.f32 0.0, %v1092
    %v1094 = vpop.f32.mrb[0].mxu0
    %1095 = vmatprep.mubr.bf16.mxu0 %v613
    %1096 = vmatmul.mubr.bf16.gmra.mrb[0].mxu0 %v612
    %v1097 = vpop.f32.mrb[0].mxu0
    %v1098 = vadd.f32 0.0, %v1097
    %v1099 = vpop.f32.mrb[0].mxu0
    %v1100 = vpop.f32.mrb[0].mxu0
    %v1101 = vadd.f32 0.0, %v1100
    %v1102 = vpop.f32.mrb[0].mxu0
    %1103 = vmatprep.mubr.bf16.mxu0 %v616
    %1104 = vmatmul.mubr.bf16.gmra.mrb[0].mxu0 %v615
    %v1105 = vpop.f32.mrb[0].mxu0
    %v1106 = vadd.f32 0.0, %v1105
    %v1107 = vpop.f32.mrb[0].mxu0
    %v1108 = vpop.f32.mrb[0].mxu0
    %v1109 = vadd.f32 0.0, %v1108
    %v1110 = vpop.f32.mrb[0].mxu0
    %1111 = vmatprep.mubr.bf16.mxu0 %v619
    %1112 = vmatmul.mubr.bf16.gmra.mrb[0].mxu0 %v618
    %v1113 = vpop.f32.mrb[0].mxu0
    %v1114 = vadd.f32 0.0, %v1113
    %v1115 = vpop.f32.mrb[0].mxu0
    %v1116 = vpop.f32.mrb[0].mxu0
    %v1117 = vadd.f32 0.0, %v1116
    %v1118 = vpop.f32.mrb[0].mxu0
    %1119 = vmatprep.mubr.bf16.mxu0 %v622
    %1120 = vmatmul.mubr.bf16.gmra.mrb[0].mxu0 %v621
    %v1121 = vpop.f32.mrb[0].mxu0
    %v1122 = vadd.f32 0.0, %v1121
    %v1123 = vpop.f32.mrb[0].mxu0
    %v1124 = vpop.f32.mrb[0].mxu0
    %v1125 = vadd.f32 0.0, %v1124
    %v1126 = vpop.f32.mrb[0].mxu0
    %1127 = vmatprep.mubr.bf16.mxu0 %v625
    %1128 = vmatmul.mubr.bf16.gmra.mrb[0].mxu0 %v624
    %v1129 = vpop.f32.mrb[0].mxu0
    %v1130 = vadd.f32 0.0, %v1129
    %v1131 = vpop.f32.mrb[0].mxu0
    %v1132 = vpop.f32.mrb[0].mxu0
    %v1133 = vadd.f32 0.0, %v1132
    %v1134 = vpop.f32.mrb[0].mxu0
    %1135 = vmatprep.mubr.bf16.mxu0 %v628
    %1136 = vmatmul.mubr.bf16.gmra.mrb[0].mxu0 %v627
    %v1137 = vpop.f32.mrb[0].mxu0
    %v1138 = vadd.f32 0.0, %v1137
    %v1139 = vpop.f32.mrb[0].mxu0
    %v1140 = vpop.f32.mrb[0].mxu0
    %v1141 = vadd.f32 0.0, %v1140
    %v1142 = vpop.f32.mrb[0].mxu0
    %1143 = vmatprep.mubr.bf16.mxu0 %v631
    %1144 = vmatmul.mubr.bf16.gmra.mrb[0].mxu0 %v630
    %v1145 = vpop.f32.mrb[0].mxu0
    %v1146 = vadd.f32 0.0, %v1145
    %v1147 = vpop.f32.mrb[0].mxu0
    %v1148 = vpop.f32.mrb[0].mxu0
    %v1149 = vadd.f32 0.0, %v1148
    %v1150 = vpop.f32.mrb[0].mxu0
    %1151 = vmatprep.mubr.bf16.mxu0 %v634
    %1152 = vmatmul.mubr.bf16.gmra.mrb[0].mxu0 %v633
    %v1153 = vpop.f32.mrb[0].mxu0
    %v1154 = vadd.f32 0.0, %v1153
    %v1155 = vpop.f32.mrb[0].mxu0
    %v1156 = vpop.f32.mrb[0].mxu0
    %v1157 = vadd.f32 0.0, %v1156
    %v1158 = vpop.f32.mrb[0].mxu0
    %1159 = vmatprep.mubr.bf16.mxu0 %v637
    %1160 = vmatmul.mubr.bf16.gmra.mrb[0].mxu0 %v636
    %v1161 = vpop.f32.mrb[0].mxu0
    %v1162 = vadd.f32 0.0, %v1161
    %v1163 = vpop.f32.mrb[0].mxu0
    %v1164 = vpop.f32.mrb[0].mxu0
    %v1165 = vadd.f32 0.0, %v1164
    %v1166 = vpop.f32.mrb[0].mxu0
    %1167 = vdwg.mxu0
    %1168 = vmatprep.subr.bf16.mxu0 0
    %1169 = vmatpush1.bf16.msra.mxu0 %v847
    %1170 = vmatprep.subr.bf16.mxu0 0
    %1171 = vmatpush1.bf16.msra.mxu0 %v848
    %1172 = vmatprep.subr.bf16.mxu0 0
    %1173 = vmatpush1.bf16.msra.mxu0 %v849
    %1174 = vmatprep.subr.bf16.mxu0 0
    %1175 = vmatpush1.bf16.msra.mxu0 %v850
    %1176 = vmatprep.subr.bf16.mxu0 0
    %1177 = vmatpush1.bf16.msra.mxu0 %v851
    %1178 = vmatprep.subr.bf16.mxu0 0
    %1179 = vmatpush1.bf16.msra.mxu0 %v852
    %1180 = vmatprep.subr.bf16.mxu0 0
    %1181 = vmatpush1.bf16.msra.mxu0 %v853
    %1182 = vmatprep.subr.bf16.mxu0 0
    %1183 = vmatpush1.bf16.msra.mxu0 %v854
    %1184 = vmatprep.subr.bf16.mxu0 0
    %1185 = vmatpush1.bf16.msra.mxu0 0
    %1186 = vmatprep.subr.bf16.mxu0 0
    %1187 = vmatpush1.bf16.msra.mxu0 0
    %1188 = vmatprep.subr.bf16.mxu0 0
    %1189 = vmatpush1.bf16.msra.mxu0 0
    %1190 = vmatprep.subr.bf16.mxu0 0
    %1191 = vmatpush1.bf16.msra.mxu0 0
    %1192 = vmatprep.subr.bf16.mxu0 0
    %1193 = vmatpush1.bf16.msra.mxu0 0
    %1194 = vmatprep.subr.bf16.mxu0 0
    %1195 = vmatpush1.bf16.msra.mxu0 0
    %1196 = vmatprep.subr.bf16.mxu0 0
    %1197 = vmatpush1.bf16.msra.mxu0 0
    %1198 = vmatprep.subr.bf16.mxu0 0
    %1199 = vmatpush1.bf16.msra.mxu0 0
    %1200 = vmatprep.mubr.bf16.mxu0 0
    %1201 = vmatmul.mubr.bf16.gmra.mrb[0].mxu0 %v545
    %v1202 = vpop.f32.mrb[0].mxu0
    %v1203 = vadd.f32 %v914, %v1202
    %v1204 = vpop.f32.mrb[0].mxu0
    %v1205 = vpop.f32.mrb[0].mxu0
    %v1206 = vadd.f32 %v917, %v1205
    %v1207 = vpop.f32.mrb[0].mxu0
    %1208 = vmatprep.mubr.bf16.mxu0 0
    %1209 = vmatmul.mubr.bf16.gmra.mrb[0].mxu0 %v548
    %v1210 = vpop.f32.mrb[0].mxu0
    %v1211 = vadd.f32 %v922, %v1210
    %v1212 = vpop.f32.mrb[0].mxu0
    %v1213 = vpop.f32.mrb[0].mxu0
    %v1214 = vadd.f32 %v925, %v1213
    %v1215 = vpop.f32.mrb[0].mxu0
    %1216 = vmatprep.mubr.bf16.mxu0 0
    %1217 = vmatmul.mubr.bf16.gmra.mrb[0].mxu0 %v551
    %v1218 = vpop.f32.mrb[0].mxu0
    %v1219 = vadd.f32 %v930, %v1218
    %v1220 = vpop.f32.mrb[0].mxu0
    %v1221 = vpop.f32.mrb[0].mxu0
    %v1222 = vadd.f32 %v933, %v1221
    %v1223 = vpop.f32.mrb[0].mxu0
    %1224 = vmatprep.mubr.bf16.mxu0 0
    %1225 = vmatmul.mubr.bf16.gmra.mrb[0].mxu0 %v554
    %v1226 = vpop.f32.mrb[0].mxu0
    %v1227 = vadd.f32 %v938, %v1226
    %v1228 = vpop.f32.mrb[0].mxu0
    %v1229 = vpop.f32.mrb[0].mxu0
    %v1230 = vadd.f32 %v941, %v1229
    %v1231 = vpop.f32.mrb[0].mxu0
    %1232 = vmatprep.mubr.bf16.mxu0 0
    %1233 = vmatmul.mubr.bf16.gmra.mrb[0].mxu0 %v557
    %v1234 = vpop.f32.mrb[0].mxu0
    %v1235 = vadd.f32 %v946, %v1234
    %v1236 = vpop.f32.mrb[0].mxu0
    %v1237 = vpop.f32.mrb[0].mxu0
    %v1238 = vadd.f32 %v949, %v1237
    %v1239 = vpop.f32.mrb[0].mxu0
    %1240 = vmatprep.mubr.bf16.mxu0 0
    %1241 = vmatmul.mubr.bf16.gmra.mrb[0].mxu0 %v560
    %v1242 = vpop.f32.mrb[0].mxu0
    %v1243 = vadd.f32 %v954, %v1242
    %v1244 = vpop.f32.mrb[0].mxu0
    %v1245 = vpop.f32.mrb[0].mxu0
    %v1246 = vadd.f32 %v957, %v1245
    %v1247 = vpop.f32.mrb[0].mxu0
    %1248 = vmatprep.mubr.bf16.mxu0 0
    %1249 = vmatmul.mubr.bf16.gmra.mrb[0].mxu0 %v563
    %v1250 = vpop.f32.mrb[0].mxu0
    %v1251 = vadd.f32 %v962, %v1250
    %v1252 = vpop.f32.mrb[0].mxu0
    %v1253 = vpop.f32.mrb[0].mxu0
    %v1254 = vadd.f32 %v965, %v1253
    %v1255 = vpop.f32.mrb[0].mxu0
    %1256 = vmatprep.mubr.bf16.mxu0 0
    %1257 = vmatmul.mubr.bf16.gmra.mrb[0].mxu0 %v566
    %v1258 = vpop.f32.mrb[0].mxu0
    %v1259 = vadd.f32 %v970, %v1258
    %v1260 = vpop.f32.mrb[0].mxu0
    %v1261 = vpop.f32.mrb[0].mxu0
    %v1262 = vadd.f32 %v973, %v1261
    %v1263 = vpop.f32.mrb[0].mxu0
    %1264 = vmatprep.mubr.bf16.mxu0 0
    %1265 = vmatmul.mubr.bf16.gmra.mrb[0].mxu0 %v569
    %v1266 = vpop.f32.mrb[0].mxu0
    %v1267 = vadd.f32 %v978, %v1266
    %v1268 = vpop.f32.mrb[0].mxu0
    %v1269 = vpop.f32.mrb[0].mxu0
    %v1270 = vadd.f32 %v981, %v1269
    %v1271 = vpop.f32.mrb[0].mxu0
    %1272 = vmatprep.mubr.bf16.mxu0 0
    %1273 = vmatmul.mubr.bf16.gmra.mrb[0].mxu0 %v572
    %v1274 = vpop.f32.mrb[0].mxu0
    %v1275 = vadd.f32 %v986, %v1274
    %v1276 = vpop.f32.mrb[0].mxu0
    %v1277 = vpop.f32.mrb[0].mxu0
    %v1278 = vadd.f32 %v989, %v1277
    %v1279 = vpop.f32.mrb[0].mxu0
    %1280 = vmatprep.mubr.bf16.mxu0 0
    %1281 = vmatmul.mubr.bf16.gmra.mrb[0].mxu0 %v575
    %v1282 = vpop.f32.mrb[0].mxu0
    %v1283 = vadd.f32 %v994, %v1282
    %v1284 = vpop.f32.mrb[0].mxu0
    %v1285 = vpop.f32.mrb[0].mxu0
    %v1286 = vadd.f32 %v997, %v1285
    %v1287 = vpop.f32.mrb[0].mxu0
    %1288 = vmatprep.mubr.bf16.mxu0 0
    %1289 = vmatmul.mubr.bf16.gmra.mrb[0].mxu0 %v578
    %v1290 = vpop.f32.mrb[0].mxu0
    %v1291 = vadd.f32 %v1002, %v1290
    %v1292 = vpop.f32.mrb[0].mxu0
    %v1293 = vpop.f32.mrb[0].mxu0
    %v1294 = vadd.f32 %v1005, %v1293
    %v1295 = vpop.f32.mrb[0].mxu0
    %1296 = vmatprep.mubr.bf16.mxu0 0
    %1297 = vmatmul.mubr.bf16.gmra.mrb[0].mxu0 %v581
    %v1298 = vpop.f32.mrb[0].mxu0
    %v1299 = vadd.f32 %v1010, %v1298
    %v1300 = vpop.f32.mrb[0].mxu0
    %v1301 = vpop.f32.mrb[0].mxu0
    %v1302 = vadd.f32 %v1013, %v1301
    %v1303 = vpop.f32.mrb[0].mxu0
    %1304 = vmatprep.mubr.bf16.mxu0 0
    %1305 = vmatmul.mubr.bf16.gmra.mrb[0].mxu0 %v584
    %v1306 = vpop.f32.mrb[0].mxu0
    %v1307 = vadd.f32 %v1018, %v1306
    %v1308 = vpop.f32.mrb[0].mxu0
    %v1309 = vpop.f32.mrb[0].mxu0
    %v1310 = vadd.f32 %v1021, %v1309
    %v1311 = vpop.f32.mrb[0].mxu0
    %1312 = vmatprep.mubr.bf16.mxu0 0
    %1313 = vmatmul.mubr.bf16.gmra.mrb[0].mxu0 %v587
    %v1314 = vpop.f32.mrb[0].mxu0
    %v1315 = vadd.f32 %v1026, %v1314
    %v1316 = vpop.f32.mrb[0].mxu0
    %v1317 = vpop.f32.mrb[0].mxu0
    %v1318 = vadd.f32 %v1029, %v1317
    %v1319 = vpop.f32.mrb[0].mxu0
    %1320 = vmatprep.mubr.bf16.mxu0 0
    %1321 = vmatmul.mubr.bf16.gmra.mrb[0].mxu0 %v590
    %v1322 = vpop.f32.mrb[0].mxu0
    %v1323 = vadd.f32 %v1034, %v1322
    %v1324 = vpop.f32.mrb[0].mxu0
    %v1325 = vpop.f32.mrb[0].mxu0
    %v1326 = vadd.f32 %v1037, %v1325
    %v1327 = vpop.f32.mrb[0].mxu0
    %1328 = vmatprep.mubr.bf16.mxu0 0
    %1329 = vmatmul.mubr.bf16.gmra.mrb[0].mxu0 %v593
    %v1330 = vpop.f32.mrb[0].mxu0
    %v1331 = vadd.f32 %v1042, %v1330
    %v1332 = vpop.f32.mrb[0].mxu0
    %v1333 = vpop.f32.mrb[0].mxu0
    %v1334 = vadd.f32 %v1045, %v1333
    %v1335 = vpop.f32.mrb[0].mxu0
    %1336 = vmatprep.mubr.bf16.mxu0 0
    %1337 = vmatmul.mubr.bf16.gmra.mrb[0].mxu0 %v596
    %v1338 = vpop.f32.mrb[0].mxu0
    %v1339 = vadd.f32 %v1050, %v1338
    %v1340 = vpop.f32.mrb[0].mxu0
    %v1341 = vpop.f32.mrb[0].mxu0
    %v1342 = vadd.f32 %v1053, %v1341
    %v1343 = vpop.f32.mrb[0].mxu0
    %1344 = vmatprep.mubr.bf16.mxu0 0
    %1345 = vmatmul.mubr.bf16.gmra.mrb[0].mxu0 %v599
    %v1346 = vpop.f32.mrb[0].mxu0
    %v1347 = vadd.f32 %v1058, %v1346
    %v1348 = vpop.f32.mrb[0].mxu0
    %v1349 = vpop.f32.mrb[0].mxu0
    %v1350 = vadd.f32 %v1061, %v1349
    %v1351 = vpop.f32.mrb[0].mxu0
    %1352 = vmatprep.mubr.bf16.mxu0 0
    %1353 = vmatmul.mubr.bf16.gmra.mrb[0].mxu0 %v602
    %v1354 = vpop.f32.mrb[0].mxu0
    %v1355 = vadd.f32 %v1066, %v1354
    %v1356 = vpop.f32.mrb[0].mxu0
    %v1357 = vpop.f32.mrb[0].mxu0
    %v1358 = vadd.f32 %v1069, %v1357
    %v1359 = vpop.f32.mrb[0].mxu0
    %1360 = vmatprep.mubr.bf16.mxu0 0
    %1361 = vmatmul.mubr.bf16.gmra.mrb[0].mxu0 %v605
    %v1362 = vpop.f32.mrb[0].mxu0
    %v1363 = vadd.f32 %v1074, %v1362
    %v1364 = vpop.f32.mrb[0].mxu0
    %v1365 = vpop.f32.mrb[0].mxu0
    %v1366 = vadd.f32 %v1077, %v1365
    %v1367 = vpop.f32.mrb[0].mxu0
    %1368 = vmatprep.mubr.bf16.mxu0 0
    %1369 = vmatmul.mubr.bf16.gmra.mrb[0].mxu0 %v608
    %v1370 = vpop.f32.mrb[0].mxu0
    %v1371 = vadd.f32 %v1082, %v1370
    %v1372 = vpop.f32.mrb[0].mxu0
    %v1373 = vpop.f32.mrb[0].mxu0
    %v1374 = vadd.f32 %v1085, %v1373
    %v1375 = vpop.f32.mrb[0].mxu0
    %1376 = vmatprep.mubr.bf16.mxu0 0
    %1377 = vmatmul.mubr.bf16.gmra.mrb[0].mxu0 %v611
    %v1378 = vpop.f32.mrb[0].mxu0
    %v1379 = vadd.f32 %v1090, %v1378
    %v1380 = vpop.f32.mrb[0].mxu0
    %v1381 = vpop.f32.mrb[0].mxu0
    %v1382 = vadd.f32 %v1093, %v1381
    %v1383 = vpop.f32.mrb[0].mxu0
    %1384 = vmatprep.mubr.bf16.mxu0 0
    %1385 = vmatmul.mubr.bf16.gmra.mrb[0].mxu0 %v614
    %v1386 = vpop.f32.mrb[0].mxu0
    %v1387 = vadd.f32 %v1098, %v1386
    %v1388 = vpop.f32.mrb[0].mxu0
    %v1389 = vpop.f32.mrb[0].mxu0
    %v1390 = vadd.f32 %v1101, %v1389
    %v1391 = vpop.f32.mrb[0].mxu0
    %1392 = vmatprep.mubr.bf16.mxu0 0
    %1393 = vmatmul.mubr.bf16.gmra.mrb[0].mxu0 %v617
    %v1394 = vpop.f32.mrb[0].mxu0
    %v1395 = vadd.f32 %v1106, %v1394
    %v1396 = vpop.f32.mrb[0].mxu0
    %v1397 = vpop.f32.mrb[0].mxu0
    %v1398 = vadd.f32 %v1109, %v1397
    %v1399 = vpop.f32.mrb[0].mxu0
    %1400 = vmatprep.mubr.bf16.mxu0 0
    %1401 = vmatmul.mubr.bf16.gmra.mrb[0].mxu0 %v620
    %v1402 = vpop.f32.mrb[0].mxu0
    %v1403 = vadd.f32 %v1114, %v1402
    %v1404 = vpop.f32.mrb[0].mxu0
    %v1405 = vpop.f32.mrb[0].mxu0
    %v1406 = vadd.f32 %v1117, %v1405
    %v1407 = vpop.f32.mrb[0].mxu0
    %1408 = vmatprep.mubr.bf16.mxu0 0
    %1409 = vmatmul.mubr.bf16.gmra.mrb[0].mxu0 %v623
    %v1410 = vpop.f32.mrb[0].mxu0
    %v1411 = vadd.f32 %v1122, %v1410
    %v1412 = vpop.f32.mrb[0].mxu0
    %v1413 = vpop.f32.mrb[0].mxu0
    %v1414 = vadd.f32 %v1125, %v1413
    %v1415 = vpop.f32.mrb[0].mxu0
    %1416 = vmatprep.mubr.bf16.mxu0 0
    %1417 = vmatmul.mubr.bf16.gmra.mrb[0].mxu0 %v626
    %v1418 = vpop.f32.mrb[0].mxu0
    %v1419 = vadd.f32 %v1130, %v1418
    %v1420 = vpop.f32.mrb[0].mxu0
    %v1421 = vpop.f32.mrb[0].mxu0
    %v1422 = vadd.f32 %v1133, %v1421
    %v1423 = vpop.f32.mrb[0].mxu0
    %1424 = vmatprep.mubr.bf16.mxu0 0
    %1425 = vmatmul.mubr.bf16.gmra.mrb[0].mxu0 %v629
    %v1426 = vpop.f32.mrb[0].mxu0
    %v1427 = vadd.f32 %v1138, %v1426
    %v1428 = vpop.f32.mrb[0].mxu0
    %v1429 = vpop.f32.mrb[0].mxu0
    %v1430 = vadd.f32 %v1141, %v1429
    %v1431 = vpop.f32.mrb[0].mxu0
    %1432 = vmatprep.mubr.bf16.mxu0 0
    %1433 = vmatmul.mubr.bf16.gmra.mrb[0].mxu0 %v632
    %v1434 = vpop.f32.mrb[0].mxu0
    %v1435 = vadd.f32 %v1146, %v1434
    %v1436 = vpop.f32.mrb[0].mxu0
    %v1437 = vpop.f32.mrb[0].mxu0
    %v1438 = vadd.f32 %v1149, %v1437
    %v1439 = vpop.f32.mrb[0].mxu0
    %1440 = vmatprep.mubr.bf16.mxu0 0
    %1441 = vmatmul.mubr.bf16.gmra.mrb[0].mxu0 %v635
    %v1442 = vpop.f32.mrb[0].mxu0
    %v1443 = vadd.f32 %v1154, %v1442
    %v1444 = vpop.f32.mrb[0].mxu0
    %v1445 = vpop.f32.mrb[0].mxu0
    %v1446 = vadd.f32 %v1157, %v1445
    %v1447 = vpop.f32.mrb[0].mxu0
    %1448 = vmatprep.mubr.bf16.mxu0 0
    %1449 = vmatmul.mubr.bf16.gmra.mrb[0].mxu0 %v638
    %v1450 = vpop.f32.mrb[0].mxu0
    %v1451 = vadd.f32 %v1162, %v1450
    %v1452 = vpop.f32.mrb[0].mxu0
    %v1453 = vpop.f32.mrb[0].mxu0
    %v1454 = vadd.f32 %v1165, %v1453
    %v1455 = vpop.f32.mrb[0].mxu0
    %1456 = vdwg.mxu0
    %v1457 = vld [vmem:[%s2] sm:$0x1]
    %v1459 = vlaneseq
    %v1460 = vshrl.u32 %v1459, 7
    %v1461 = vsub.s32 0, %v1460
    %v1462 = vrot.slane %v1457, %v1461
    %v1464 = vmul.f32 %v1203, %v1462
    %v1465 = vmul.f32 %v1206, %v1462
    %v1466 = vmul.f32 %v1211, %v1462
    %v1467 = vmul.f32 %v1214, %v1462
    %v1468 = vmul.f32 %v1219, %v1462
    %v1469 = vmul.f32 %v1222, %v1462
    %v1470 = vmul.f32 %v1227, %v1462
    %v1471 = vmul.f32 %v1230, %v1462
    %v1472 = vmul.f32 %v1235, %v1462
    %v1473 = vmul.f32 %v1238, %v1462
    %v1474 = vmul.f32 %v1243, %v1462
    %v1475 = vmul.f32 %v1246, %v1462
    %v1476 = vmul.f32 %v1251, %v1462
    %v1477 = vmul.f32 %v1254, %v1462
    %v1478 = vmul.f32 %v1259, %v1462
    %v1479 = vmul.f32 %v1262, %v1462
    %v1480 = vmul.f32 %v1267, %v1462
    %v1481 = vmul.f32 %v1270, %v1462
    %v1482 = vmul.f32 %v1275, %v1462
    %v1483 = vmul.f32 %v1278, %v1462
    %v1484 = vmul.f32 %v1283, %v1462
    %v1485 = vmul.f32 %v1286, %v1462
    %v1486 = vmul.f32 %v1291, %v1462
    %v1487 = vmul.f32 %v1294, %v1462
    %v1488 = vmul.f32 %v1299, %v1462
    %v1489 = vmul.f32 %v1302, %v1462
    %v1490 = vmul.f32 %v1307, %v1462
    %v1491 = vmul.f32 %v1310, %v1462
    %v1492 = vmul.f32 %v1315, %v1462
    %v1493 = vmul.f32 %v1318, %v1462
    %v1494 = vmul.f32 %v1323, %v1462
    %v1495 = vmul.f32 %v1326, %v1462
    %v1496 = vmul.f32 %v1331, %v1462
    %v1497 = vmul.f32 %v1334, %v1462
    %v1498 = vmul.f32 %v1339, %v1462
    %v1499 = vmul.f32 %v1342, %v1462
    %v1500 = vmul.f32 %v1347, %v1462
    %v1501 = vmul.f32 %v1350, %v1462
    %v1502 = vmul.f32 %v1355, %v1462
    %v1503 = vmul.f32 %v1358, %v1462
    %v1504 = vmul.f32 %v1363, %v1462
    %v1505 = vmul.f32 %v1366, %v1462
    %v1506 = vmul.f32 %v1371, %v1462
    %v1507 = vmul.f32 %v1374, %v1462
    %v1508 = vmul.f32 %v1379, %v1462
    %v1509 = vmul.f32 %v1382, %v1462
    %v1510 = vmul.f32 %v1387, %v1462
    %v1511 = vmul.f32 %v1390, %v1462
    %v1512 = vmul.f32 %v1395, %v1462
    %v1513 = vmul.f32 %v1398, %v1462
    %v1514 = vmul.f32 %v1403, %v1462
    %v1515 = vmul.f32 %v1406, %v1462
    %v1516 = vmul.f32 %v1411, %v1462
    %v1517 = vmul.f32 %v1414, %v1462
    %v1518 = vmul.f32 %v1419, %v1462
    %v1519 = vmul.f32 %v1422, %v1462
    %v1520 = vmul.f32 %v1427, %v1462
    %v1521 = vmul.f32 %v1430, %v1462
    %v1522 = vmul.f32 %v1435, %v1462
    %v1523 = vmul.f32 %v1438, %v1462
    %v1524 = vmul.f32 %v1443, %v1462
    %v1525 = vmul.f32 %v1446, %v1462
    %v1526 = vmul.f32 %v1451, %v1462
    %v1527 = vmul.f32 %v1454, %v1462
    %v1528 = vld [vmem:[%s3] sm:$0x1]
    %v1530 = vlaneseq
    %v1531 = vshrl.u32 %v1530, 7
    %v1532 = vsub.s32 0, %v1531
    %v1533 = vrot.slane %v1528, %v1532
    %v1535 = vadd.f32 %v1464, %v1533
    %v1536 = vadd.f32 %v1465, %v1533
    %v1537 = vadd.f32 %v1466, %v1533
    %v1538 = vadd.f32 %v1467, %v1533
    %v1539 = vadd.f32 %v1468, %v1533
    %v1540 = vadd.f32 %v1469, %v1533
    %v1541 = vadd.f32 %v1470, %v1533
    %v1542 = vadd.f32 %v1471, %v1533
    %v1543 = vadd.f32 %v1472, %v1533
    %v1544 = vadd.f32 %v1473, %v1533
    %v1545 = vadd.f32 %v1474, %v1533
    %v1546 = vadd.f32 %v1475, %v1533
    %v1547 = vadd.f32 %v1476, %v1533
    %v1548 = vadd.f32 %v1477, %v1533
    %v1549 = vadd.f32 %v1478, %v1533
    %v1550 = vadd.f32 %v1479, %v1533
    %v1551 = vadd.f32 %v1480, %v1533
    %v1552 = vadd.f32 %v1481, %v1533
    %v1553 = vadd.f32 %v1482, %v1533
    %v1554 = vadd.f32 %v1483, %v1533
    %v1555 = vadd.f32 %v1484, %v1533
    %v1556 = vadd.f32 %v1485, %v1533
    %v1557 = vadd.f32 %v1486, %v1533
    %v1558 = vadd.f32 %v1487, %v1533
    %v1559 = vadd.f32 %v1488, %v1533
    %v1560 = vadd.f32 %v1489, %v1533
    %v1561 = vadd.f32 %v1490, %v1533
    %v1562 = vadd.f32 %v1491, %v1533
    %v1563 = vadd.f32 %v1492, %v1533
    %v1564 = vadd.f32 %v1493, %v1533
    %v1565 = vadd.f32 %v1494, %v1533
    %v1566 = vadd.f32 %v1495, %v1533
    %v1567 = vadd.f32 %v1496, %v1533
    %v1568 = vadd.f32 %v1497, %v1533
    %v1569 = vadd.f32 %v1498, %v1533
    %v1570 = vadd.f32 %v1499, %v1533
    %v1571 = vadd.f32 %v1500, %v1533
    %v1572 = vadd.f32 %v1501, %v1533
    %v1573 = vadd.f32 %v1502, %v1533
    %v1574 = vadd.f32 %v1503, %v1533
    %v1575 = vadd.f32 %v1504, %v1533
    %v1576 = vadd.f32 %v1505, %v1533
    %v1577 = vadd.f32 %v1506, %v1533
    %v1578 = vadd.f32 %v1507, %v1533
    %v1579 = vadd.f32 %v1508, %v1533
    %v1580 = vadd.f32 %v1509, %v1533
    %v1581 = vadd.f32 %v1510, %v1533
    %v1582 = vadd.f32 %v1511, %v1533
    %v1583 = vadd.f32 %v1512, %v1533
    %v1584 = vadd.f32 %v1513, %v1533
    %v1585 = vadd.f32 %v1514, %v1533
    %v1586 = vadd.f32 %v1515, %v1533
    %v1587 = vadd.f32 %v1516, %v1533
    %v1588 = vadd.f32 %v1517, %v1533
    %v1589 = vadd.f32 %v1518, %v1533
    %v1590 = vadd.f32 %v1519, %v1533
    %v1591 = vadd.f32 %v1520, %v1533
    %v1592 = vadd.f32 %v1521, %v1533
    %v1593 = vadd.f32 %v1522, %v1533
    %v1594 = vadd.f32 %v1523, %v1533
    %v1595 = vadd.f32 %v1524, %v1533
    %v1596 = vadd.f32 %v1525, %v1533
    %v1597 = vadd.f32 %v1526, %v1533
    %v1598 = vadd.f32 %v1527, %v1533
    %v1599 = vmax.f32 %v1535, 0.0
    %v1600 = vmax.f32 %v1536, 0.0
    %v1601 = vmax.f32 %v1537, 0.0
    %v1602 = vmax.f32 %v1538, 0.0
    %v1603 = vmax.f32 %v1539, 0.0
    %v1604 = vmax.f32 %v1540, 0.0
    %v1605 = vmax.f32 %v1541, 0.0
    %v1606 = vmax.f32 %v1542, 0.0
    %v1607 = vmax.f32 %v1543, 0.0
    %v1608 = vmax.f32 %v1544, 0.0
    %v1609 = vmax.f32 %v1545, 0.0
    %v1610 = vmax.f32 %v1546, 0.0
    %v1611 = vmax.f32 %v1547, 0.0
    %v1612 = vmax.f32 %v1548, 0.0
    %v1613 = vmax.f32 %v1549, 0.0
    %v1614 = vmax.f32 %v1550, 0.0
    %v1615 = vmax.f32 %v1551, 0.0
    %v1616 = vmax.f32 %v1552, 0.0
    %v1617 = vmax.f32 %v1553, 0.0
    %v1618 = vmax.f32 %v1554, 0.0
    %v1619 = vmax.f32 %v1555, 0.0
    %v1620 = vmax.f32 %v1556, 0.0
    %v1621 = vmax.f32 %v1557, 0.0
    %v1622 = vmax.f32 %v1558, 0.0
    %v1623 = vmax.f32 %v1559, 0.0
    %v1624 = vmax.f32 %v1560, 0.0
    %v1625 = vmax.f32 %v1561, 0.0
    %v1626 = vmax.f32 %v1562, 0.0
    %v1627 = vmax.f32 %v1563, 0.0
    %v1628 = vmax.f32 %v1564, 0.0
    %v1629 = vmax.f32 %v1565, 0.0
    %v1630 = vmax.f32 %v1566, 0.0
    %v1631 = vmax.f32 %v1567, 0.0
    %v1632 = vmax.f32 %v1568, 0.0
    %v1633 = vmax.f32 %v1569, 0.0
    %v1634 = vmax.f32 %v1570, 0.0
    %v1635 = vmax.f32 %v1571, 0.0
    %v1636 = vmax.f32 %v1572, 0.0
    %v1637 = vmax.f32 %v1573, 0.0
    %v1638 = vmax.f32 %v1574, 0.0
    %v1639 = vmax.f32 %v1575, 0.0
    %v1640 = vmax.f32 %v1576, 0.0
    %v1641 = vmax.f32 %v1577, 0.0
    %v1642 = vmax.f32 %v1578, 0.0
    %v1643 = vmax.f32 %v1579, 0.0
    %v1644 = vmax.f32 %v1580, 0.0
    %v1645 = vmax.f32 %v1581, 0.0
    %v1646 = vmax.f32 %v1582, 0.0
    %v1647 = vmax.f32 %v1583, 0.0
    %v1648 = vmax.f32 %v1584, 0.0
    %v1649 = vmax.f32 %v1585, 0.0
    %v1650 = vmax.f32 %v1586, 0.0
    %v1651 = vmax.f32 %v1587, 0.0
    %v1652 = vmax.f32 %v1588, 0.0
    %v1653 = vmax.f32 %v1589, 0.0
    %v1654 = vmax.f32 %v1590, 0.0
    %v1655 = vmax.f32 %v1591, 0.0
    %v1656 = vmax.f32 %v1592, 0.0
    %v1657 = vmax.f32 %v1593, 0.0
    %v1658 = vmax.f32 %v1594, 0.0
    %v1659 = vmax.f32 %v1595, 0.0
    %v1660 = vmax.f32 %v1596, 0.0
    %v1661 = vmax.f32 %v1597, 0.0
    %v1662 = vmax.f32 %v1598, 0.0
    %v1663 = vpack.c.bf16 %v1600, %v1599
    %v1664 = vpack.c.bf16 %v1602, %v1601
    %v1665 = vpack.c.bf16 %v1604, %v1603
    %v1666 = vpack.c.bf16 %v1606, %v1605
    %v1667 = vpack.c.bf16 %v1608, %v1607
    %v1668 = vpack.c.bf16 %v1610, %v1609
    %v1669 = vpack.c.bf16 %v1612, %v1611
    %v1670 = vpack.c.bf16 %v1614, %v1613
    %v1671 = vpack.c.bf16 %v1616, %v1615
    %v1672 = vpack.c.bf16 %v1618, %v1617
    %v1673 = vpack.c.bf16 %v1620, %v1619
    %v1674 = vpack.c.bf16 %v1622, %v1621
    %v1675 = vpack.c.bf16 %v1624, %v1623
    %v1676 = vpack.c.bf16 %v1626, %v1625
    %v1677 = vpack.c.bf16 %v1628, %v1627
    %v1678 = vpack.c.bf16 %v1630, %v1629
    %v1679 = vpack.c.bf16 %v1632, %v1631
    %v1680 = vpack.c.bf16 %v1634, %v1633
    %v1681 = vpack.c.bf16 %v1636, %v1635
    %v1682 = vpack.c.bf16 %v1638, %v1637
    %v1683 = vpack.c.bf16 %v1640, %v1639
    %v1684 = vpack.c.bf16 %v1642, %v1641
    %v1685 = vpack.c.bf16 %v1644, %v1643
    %v1686 = vpack.c.bf16 %v1646, %v1645
    %v1687 = vpack.c.bf16 %v1648, %v1647
    %v1688 = vpack.c.bf16 %v1650, %v1649
    %v1689 = vpack.c.bf16 %v1652, %v1651
    %v1690 = vpack.c.bf16 %v1654, %v1653
    %v1691 = vpack.c.bf16 %v1656, %v1655
    %v1692 = vpack.c.bf16 %v1658, %v1657
    %v1693 = vpack.c.bf16 %v1660, %v1659
    %v1694 = vpack.c.bf16 %v1662, %v1661
    %v1727 = vunpack.c.l.b16 %v1663
    %v1728 = vunpack.c.h.b16 %v1663
    %v1729 = vunpack.c.l.b16 %v1664
    %v1730 = vunpack.c.h.b16 %v1664
    %v1731 = vunpack.c.l.b16 %v1665
    %v1732 = vunpack.c.h.b16 %v1665
    %v1733 = vunpack.c.l.b16 %v1666
    %v1734 = vunpack.c.h.b16 %v1666
    %v1735 = vunpack.c.l.b16 %v1667
    %v1736 = vunpack.c.h.b16 %v1667
    %v1737 = vunpack.c.l.b16 %v1668
    %v1738 = vunpack.c.h.b16 %v1668
    %v1739 = vunpack.c.l.b16 %v1669
    %v1740 = vunpack.c.h.b16 %v1669
    %v1741 = vunpack.c.l.b16 %v1670
    %v1742 = vunpack.c.h.b16 %v1670
    %v1743 = vunpack.c.l.b16 %v1671
    %v1744 = vunpack.c.h.b16 %v1671
    %v1745 = vunpack.c.l.b16 %v1672
    %v1746 = vunpack.c.h.b16 %v1672
    %v1747 = vunpack.c.l.b16 %v1673
    %v1748 = vunpack.c.h.b16 %v1673
    %v1749 = vunpack.c.l.b16 %v1674
    %v1750 = vunpack.c.h.b16 %v1674
    %v1751 = vunpack.c.l.b16 %v1675
    %v1752 = vunpack.c.h.b16 %v1675
    %v1753 = vunpack.c.l.b16 %v1676
    %v1754 = vunpack.c.h.b16 %v1676
    %v1755 = vunpack.c.l.b16 %v1677
    %v1756 = vunpack.c.h.b16 %v1677
    %v1757 = vunpack.c.l.b16 %v1678
    %v1758 = vunpack.c.h.b16 %v1678
    %v1759 = vunpack.c.l.b16 %v1679
    %v1760 = vunpack.c.h.b16 %v1679
    %v1761 = vunpack.c.l.b16 %v1680
    %v1762 = vunpack.c.h.b16 %v1680
    %v1763 = vunpack.c.l.b16 %v1681
    %v1764 = vunpack.c.h.b16 %v1681
    %v1765 = vunpack.c.l.b16 %v1682
    %v1766 = vunpack.c.h.b16 %v1682
    %v1767 = vunpack.c.l.b16 %v1683
    %v1768 = vunpack.c.h.b16 %v1683
    %v1769 = vunpack.c.l.b16 %v1684
    %v1770 = vunpack.c.h.b16 %v1684
    %v1771 = vunpack.c.l.b16 %v1685
    %v1772 = vunpack.c.h.b16 %v1685
    %v1773 = vunpack.c.l.b16 %v1686
    %v1774 = vunpack.c.h.b16 %v1686
    %v1775 = vunpack.c.l.b16 %v1687
    %v1776 = vunpack.c.h.b16 %v1687
    %v1777 = vunpack.c.l.b16 %v1688
    %v1778 = vunpack.c.h.b16 %v1688
    %v1779 = vunpack.c.l.b16 %v1689
    %v1780 = vunpack.c.h.b16 %v1689
    %v1781 = vunpack.c.l.b16 %v1690
    %v1782 = vunpack.c.h.b16 %v1690
    %v1783 = vunpack.c.l.b16 %v1691
    %v1784 = vunpack.c.h.b16 %v1691
    %v1785 = vunpack.c.l.b16 %v1692
    %v1786 = vunpack.c.h.b16 %v1692
    %v1787 = vunpack.c.l.b16 %v1693
    %v1788 = vunpack.c.h.b16 %v1693
    %v1789 = vunpack.c.l.b16 %v1694
    %v1790 = vunpack.c.h.b16 %v1694
    %v1791 = vpack.c.b16 %v1727, %v1727
    %v1792 = vpack.c.b16 %v1728, %v1728
    %v1793 = vpack.c.b16 %v1729, %v1729
    %v1794 = vpack.c.b16 %v1730, %v1730
    %v1795 = vpack.c.b16 %v1731, %v1731
    %v1796 = vpack.c.b16 %v1732, %v1732
    %v1797 = vpack.c.b16 %v1733, %v1733
    %v1798 = vpack.c.b16 %v1734, %v1734
    %v1799 = vpack.c.b16 %v1735, %v1735
    %v1800 = vpack.c.b16 %v1736, %v1736
    %v1801 = vpack.c.b16 %v1737, %v1737
    %v1802 = vpack.c.b16 %v1738, %v1738
    %v1803 = vpack.c.b16 %v1739, %v1739
    %v1804 = vpack.c.b16 %v1740, %v1740
    %v1805 = vpack.c.b16 %v1741, %v1741
    %v1806 = vpack.c.b16 %v1742, %v1742
    %v1807 = vpack.c.b16 %v1743, %v1743
    %v1808 = vpack.c.b16 %v1744, %v1744
    %v1809 = vpack.c.b16 %v1745, %v1745
    %v1810 = vpack.c.b16 %v1746, %v1746
    %v1811 = vpack.c.b16 %v1747, %v1747
    %v1812 = vpack.c.b16 %v1748, %v1748
    %v1813 = vpack.c.b16 %v1749, %v1749
    %v1814 = vpack.c.b16 %v1750, %v1750
    %v1815 = vpack.c.b16 %v1751, %v1751
    %v1816 = vpack.c.b16 %v1752, %v1752
    %v1817 = vpack.c.b16 %v1753, %v1753
    %v1818 = vpack.c.b16 %v1754, %v1754
    %v1819 = vpack.c.b16 %v1755, %v1755
    %v1820 = vpack.c.b16 %v1756, %v1756
    %v1821 = vpack.c.b16 %v1757, %v1757
    %v1822 = vpack.c.b16 %v1758, %v1758
    %v1823 = vpack.c.b16 %v1759, %v1759
    %v1824 = vpack.c.b16 %v1760, %v1760
    %v1825 = vpack.c.b16 %v1761, %v1761
    %v1826 = vpack.c.b16 %v1762, %v1762
    %v1827 = vpack.c.b16 %v1763, %v1763
    %v1828 = vpack.c.b16 %v1764, %v1764
    %v1829 = vpack.c.b16 %v1765, %v1765
    %v1830 = vpack.c.b16 %v1766, %v1766
    %v1831 = vpack.c.b16 %v1767, %v1767
    %v1832 = vpack.c.b16 %v1768, %v1768
    %v1833 = vpack.c.b16 %v1769, %v1769
    %v1834 = vpack.c.b16 %v1770, %v1770
    %v1835 = vpack.c.b16 %v1771, %v1771
    %v1836 = vpack.c.b16 %v1772, %v1772
    %v1837 = vpack.c.b16 %v1773, %v1773
    %v1838 = vpack.c.b16 %v1774, %v1774
    %v1839 = vpack.c.b16 %v1775, %v1775
    %v1840 = vpack.c.b16 %v1776, %v1776
    %v1841 = vpack.c.b16 %v1777, %v1777
    %v1842 = vpack.c.b16 %v1778, %v1778
    %v1843 = vpack.c.b16 %v1779, %v1779
    %v1844 = vpack.c.b16 %v1780, %v1780
    %v1845 = vpack.c.b16 %v1781, %v1781
    %v1846 = vpack.c.b16 %v1782, %v1782
    %v1847 = vpack.c.b16 %v1783, %v1783
    %v1848 = vpack.c.b16 %v1784, %v1784
    %v1849 = vpack.c.b16 %v1785, %v1785
    %v1850 = vpack.c.b16 %v1786, %v1786
    %v1851 = vpack.c.b16 %v1787, %v1787
    %v1852 = vpack.c.b16 %v1788, %v1788
    %v1853 = vpack.c.b16 %v1789, %v1789
    %v1854 = vpack.c.b16 %v1790, %v1790
    %1919 = vst [vmem:[#allocation7] sm:$0xf] %v1791
    %1920 = vst [vmem:[#allocation7 + $0x4] sm:$0xf] %v1792
    %1921 = vst [vmem:[#allocation7 + $0x8] sm:$0xf] %v1793
    %1922 = vst [vmem:[#allocation7 + $0xc] sm:$0xf] %v1794
    %1923 = vst [vmem:[#allocation7 + $0x10] sm:$0xf] %v1795
    %1924 = vst [vmem:[#allocation7 + $0x14] sm:$0xf] %v1796
    %1925 = vst [vmem:[#allocation7 + $0x18] sm:$0xf] %v1797
    %1926 = vst [vmem:[#allocation7 + $0x1c] sm:$0xf] %v1798
    %1927 = vst [vmem:[#allocation7 + $0x20] sm:$0xf] %v1799
    %1928 = vst [vmem:[#allocation7 + $0x24] sm:$0xf] %v1800
    %1929 = vst [vmem:[#allocation7 + $0x28] sm:$0xf] %v1801
    %1930 = vst [vmem:[#allocation7 + $0x2c] sm:$0xf] %v1802
    %1931 = vst [vmem:[#allocation7 + $0x30] sm:$0xf] %v1803
    %1932 = vst [vmem:[#allocation7 + $0x34] sm:$0xf] %v1804
    %1933 = vst [vmem:[#allocation7 + $0x38] sm:$0xf] %v1805
    %1934 = vst [vmem:[#allocation7 + $0x3c] sm:$0xf] %v1806
    %1935 = vst [vmem:[#allocation7 + $0x40] sm:$0xf] %v1807
    %1936 = vst [vmem:[#allocation7 + $0x44] sm:$0xf] %v1808
    %1937 = vst [vmem:[#allocation7 + $0x48] sm:$0xf] %v1809
    %1938 = vst [vmem:[#allocation7 + $0x4c] sm:$0xf] %v1810
    %1939 = vst [vmem:[#allocation7 + $0x50] sm:$0xf] %v1811
    %1940 = vst [vmem:[#allocation7 + $0x54] sm:$0xf] %v1812
    %1941 = vst [vmem:[#allocation7 + $0x58] sm:$0xf] %v1813
    %1942 = vst [vmem:[#allocation7 + $0x5c] sm:$0xf] %v1814
    %1943 = vst [vmem:[#allocation7 + $0x60] sm:$0xf] %v1815
    %1944 = vst [vmem:[#allocation7 + $0x64] sm:$0xf] %v1816
    %1945 = vst [vmem:[#allocation7 + $0x68] sm:$0xf] %v1817
    %1946 = vst [vmem:[#allocation7 + $0x6c] sm:$0xf] %v1818
    %1947 = vst [vmem:[#allocation7 + $0x70] sm:$0xf] %v1819
    %1948 = vst [vmem:[#allocation7 + $0x74] sm:$0xf] %v1820
    %1949 = vst [vmem:[#allocation7 + $0x78] sm:$0xf] %v1821
    %1950 = vst [vmem:[#allocation7 + $0x7c] sm:$0xf] %v1822
    %1951 = vst [vmem:[#allocation7 + $0x80] sm:$0xf] %v1823
    %1952 = vst [vmem:[#allocation7 + $0x84] sm:$0xf] %v1824
    %1953 = vst [vmem:[#allocation7 + $0x88] sm:$0xf] %v1825
    %1954 = vst [vmem:[#allocation7 + $0x8c] sm:$0xf] %v1826
    %1955 = vst [vmem:[#allocation7 + $0x90] sm:$0xf] %v1827
    %1956 = vst [vmem:[#allocation7 + $0x94] sm:$0xf] %v1828
    %1957 = vst [vmem:[#allocation7 + $0x98] sm:$0xf] %v1829
    %1958 = vst [vmem:[#allocation7 + $0x9c] sm:$0xf] %v1830
    %1959 = vst [vmem:[#allocation7 + $0xa0] sm:$0xf] %v1831
    %1960 = vst [vmem:[#allocation7 + $0xa4] sm:$0xf] %v1832
    %1961 = vst [vmem:[#allocation7 + $0xa8] sm:$0xf] %v1833
    %1962 = vst [vmem:[#allocation7 + $0xac] sm:$0xf] %v1834
    %1963 = vst [vmem:[#allocation7 + $0xb0] sm:$0xf] %v1835
    %1964 = vst [vmem:[#allocation7 + $0xb4] sm:$0xf] %v1836
    %1965 = vst [vmem:[#allocation7 + $0xb8] sm:$0xf] %v1837
    %1966 = vst [vmem:[#allocation7 + $0xbc] sm:$0xf] %v1838
    %1967 = vst [vmem:[#allocation7 + $0xc0] sm:$0xf] %v1839
    %1968 = vst [vmem:[#allocation7 + $0xc4] sm:$0xf] %v1840
    %1969 = vst [vmem:[#allocation7 + $0xc8] sm:$0xf] %v1841
    %1970 = vst [vmem:[#allocation7 + $0xcc] sm:$0xf] %v1842
    %1971 = vst [vmem:[#allocation7 + $0xd0] sm:$0xf] %v1843
    %1972 = vst [vmem:[#allocation7 + $0xd4] sm:$0xf] %v1844
    %1973 = vst [vmem:[#allocation7 + $0xd8] sm:$0xf] %v1845
    %1974 = vst [vmem:[#allocation7 + $0xdc] sm:$0xf] %v1846
    %1975 = vst [vmem:[#allocation7 + $0xe0] sm:$0xf] %v1847
    %1976 = vst [vmem:[#allocation7 + $0xe4] sm:$0xf] %v1848
    %1977 = vst [vmem:[#allocation7 + $0xe8] sm:$0xf] %v1849
    %1978 = vst [vmem:[#allocation7 + $0xec] sm:$0xf] %v1850
    %1979 = vst [vmem:[#allocation7 + $0xf0] sm:$0xf] %v1851
    %1980 = vst [vmem:[#allocation7 + $0xf4] sm:$0xf] %v1852
    %1981 = vst [vmem:[#allocation7 + $0xf8] sm:$0xf] %v1853
    %1982 = vst [vmem:[#allocation7 + $0xfc] sm:$0xf] %v1854
    // Predicated region
    $region26: #{mm_bn_relu.1} parent=1 // pred_check
      _
    $region27: #{mm_bn_relu.1} parent=1 // pred_check_branch
      %1984 = sbr.rel (0) target = $region29
    $region28: #{mm_bn_relu.1} parent=1 // pred_region
      %s1986 = ssub.s32 4096, 4096
      %1987 = vsyncadd [#allocation4], %s1986
      %s1988 = sshll.u32 [#allocation7], 4
      %s1989 = int_to_ptr.vmem [resolvable:$true] %s1988
      %1994 = dma.vmem_to_hbm [thread:$0]  %s1989, 4096, %s4, [#allocation4], 64, 64, 4
    $region29: #{mm_bn_relu.1} parent=1 // pred_fallthru
      _
    // Predicated region
    $region30: #{mm_bn_relu.1} parent=1 // pred_check
      _
    $region31: #{mm_bn_relu.1} parent=1 // pred_check_branch
      %1996 = sbr.rel (0) target = $region33
    $region32: #{mm_bn_relu.1} parent=1 // pred_region
      %1997 = dma.done [#allocation4], 4096
    $region33: #{mm_bn_relu.1} parent=1 // pred_fallthru
      _
    %1998 = vsyncpa [#allocation3], 1
    %1999 = vsyncpa [#allocation6], 1
    %2000 = vsyncpa [#allocation4], 1

</llo_original>
